<compile_context>
chip_gen: v7x
topology: tpu7x:2x2x1
jax: 0.10.0
libtpu: 0.0.40
codegen_flags: <defaults>
</compile_context>

<pallas_src>
import functools

import jax
import jax.numpy as jnp
from jax.experimental import pallas as pl
from jax.experimental.pallas import tpu as pltpu


def _round_up(x, m):
    return (x + m - 1) // m * m


# ---------------------------------------------------------------------------
# Fused kernel: embedding -> IIB -> head -> OIB, one row tile per grid step.
# All weights resident in VMEM (full-spec, single-buffered); activations stay
# in VMEM / vregs.  Matmuls run bf16 x bf16 -> f32 accumulation on the MXU;
# bias/ReLU/residual math stays f32 on the VPU.
# ---------------------------------------------------------------------------
def _fused_forward_kernel(
        row_ref,
        emb_w_ref, emb_b_ref,
        i_wa_ref, i_ba_ref, i_wc_ref, i_bc_ref,
        i_w1_ref, i_b1_ref, i_w2_ref, i_b2_ref,
        head_w_ref, head_b_ref,
        o_wa_ref, o_ba_ref, o_wc_ref, o_bc_ref,
        o_w1_ref, o_b1_ref, o_w2_ref, o_b2_ref,
        out_ref, *, d_cov):
    f32 = jnp.float32
    bf16 = jnp.bfloat16

    row = row_ref[...].astype(f32)                 # (tm, 2*d_cov + 1)
    pcov = row[:, 0:d_cov]                         # (tm, d_cov)
    fcov = row[:, d_cov:2 * d_cov]                 # (tm, d_cov)
    xv = row[:, 2 * d_cov:2 * d_cov + 1]           # (tm, 1) raw scalar series

    # frozen base-model embedding stub: emb = x * We + be   -> (tm, d_model), f32
    emb = xv * emb_w_ref[...] + emb_b_ref[...]

    # ---- InputInjectionBlock: emb + FFN(relu(emb@We+be) ++ relu(cov@Wc+bc)) ----
    a = jnp.maximum(
        jnp.dot(emb.astype(bf16), i_wa_ref[...], preferred_element_type=f32)
        + i_ba_ref[...], 0.0)
    c = jnp.maximum(
        jnp.dot(pcov.astype(bf16), i_wc_ref[...], preferred_element_type=f32)
        + i_bc_ref[...], 0.0)
    cat = jnp.concatenate([a, c], axis=-1).astype(bf16)          # (tm, 2H)
    h = jnp.maximum(
        jnp.dot(cat, i_w1_ref[...], preferred_element_type=f32) + i_b1_ref[...], 0.0)
    hidden = (emb
              + jnp.dot(h.astype(bf16), i_w2_ref[...], preferred_element_type=f32)
              + i_b2_ref[...])

    # ---- frozen head stub: original logits ----
    hid_bf = hidden.astype(bf16)
    logits = (jnp.dot(hid_bf, head_w_ref[...], preferred_element_type=f32)
              + head_b_ref[...])

    # ---- OutputInjectionBlock: logits + FFN(relu(h@Wo+bo) ++ relu(cov@Wc+bc)) ----
    a2 = jnp.maximum(
        jnp.dot(hid_bf, o_wa_ref[...], preferred_element_type=f32) + o_ba_ref[...], 0.0)
    c2 = jnp.maximum(
        jnp.dot(fcov.astype(bf16), o_wc_ref[...], preferred_element_type=f32)
        + o_bc_ref[...], 0.0)
    cat2 = jnp.concatenate([a2, c2], axis=-1).astype(bf16)       # (tm, 2H)
    h2 = jnp.maximum(
        jnp.dot(cat2, o_w1_ref[...], preferred_element_type=f32) + o_b1_ref[...], 0.0)
    out_ref[...] = (logits
                    + jnp.dot(h2.astype(bf16), o_w2_ref[...],
                              preferred_element_type=f32)
                    + o_b2_ref[...]).astype(out_ref.dtype)


# ---------------------------------------------------------------------------
# Wrapper: input packing, row/output padding, BlockSpecs, VMEM budget, grid.
# ---------------------------------------------------------------------------
def fused_adapter_forward(x_flat, pcov_flat, fcov_flat, params, *, tm=256):
    """x_flat:(M,) raw series; pcov/fcov:(M,d_cov). Returns logits (M, d_out)."""
    M = x_flat.shape[0]
    d_cov = pcov_flat.shape[-1]

    base, iib, oib = params["base"], params["iib"], params["oib"]
    d_model = base["embed_w"].shape[-1]
    H = iib["w_a"].shape[-1]
    d_out = base["head_w"].shape[-1]
    bf16 = jnp.bfloat16

    # Lane-dense output: pad the output feature dim up to a multiple of 128 so
    # the store path uses full vector stores (sliced back by the caller).
    # TODO(synk): consumers that can slice lazily should take the padded buffer.
    d_out_pad = _round_up(max(d_out, 128), 128)
    pad_n = d_out_pad - d_out
    head_w = jnp.pad(base["head_w"], ((0, 0), (0, pad_n))).astype(bf16)
    head_b = jnp.pad(base["head_b"], ((0, 0), (0, pad_n)))
    o_w2 = jnp.pad(oib["w2"], ((0, 0), (0, pad_n))).astype(bf16)
    o_b2 = jnp.pad(oib["b2"], ((0, 0), (0, pad_n)))

    # Row tiling.  Keep the grid length >= 2 whenever possible so both v7x
    # TensorCores get work; cap the tile so the VMEM budget holds on 64 MiB parts.
    # (Row-streamed data stays f32, so a multiple-of-8 sublane tile is valid.)
    if M > tm:
        tm_eff = tm
    elif M > 8:
        tm_eff = _round_up(pl.cdiv(M, 2), 8)     # split small M into two tiles
    else:
        tm_eff = _round_up(max(M, 1), 8)
    M_pad = _round_up(M, tm_eff)

    # Pack the three narrow row-streamed inputs into one array -> one DMA stream
    # per grid step.  Order: [past_cov | future_cov | x] (past_cov lane-aligned at 0).
    packed = jnp.concatenate(
        [pcov_flat, fcov_flat, x_flat.reshape(M, 1)], axis=-1).astype(jnp.float32)
    if M_pad != M:
        packed = jnp.pad(packed, ((0, M_pad - M), (0, 0)))
    row_w = 2 * d_cov + 1

    row_spec = pl.BlockSpec((tm_eff, row_w), lambda i: (i, 0))
    out_spec = pl.BlockSpec((tm_eff, d_out_pad), lambda i: (i, 0))

    # Constant weights: full-array block, same index every step -> single buffer.
    def const_spec(a):
        return pl.BlockSpec(a.shape, lambda i: (0, 0), pipeline_mode=pl.Buffered(1))

    weights = [
        base["embed_w"], base["embed_b"],
        iib["w_a"].astype(bf16), iib["b_a"], iib["w_c"].astype(bf16), iib["b_c"],
        iib["w1"].astype(bf16), iib["b1"], iib["w2"].astype(bf16), iib["b2"],
        head_w, head_b,
        oib["w_a"].astype(bf16), oib["b_a"], oib["w_c"].astype(bf16), oib["b_c"],
        oib["w1"].astype(bf16), oib["b1"], o_w2, o_b2,
    ]

    # Explicit VMEM budget: weights x1 buffer + double-buffered row/output tiles
    # + rough activation working set, with headroom; capped at 64 MiB (v7x).
    weight_bytes = sum(int(w.size) * w.dtype.itemsize for w in weights)
    io_bytes = 2 * tm_eff * (row_w + d_out_pad) * 4
    act_bytes = tm_eff * (3 * d_model + 6 * H + 2 * d_out_pad) * 4
    vmem_limit = int(min(max(2 * (weight_bytes + io_bytes + act_bytes), 16 << 20),
                         64 << 20))

    # 9 matmuls per row (embed is elementwise).
    flops_per_row = 2 * (d_model * H + d_cov * H + 2 * H * H + H * d_model
                         + d_model * d_out_pad
                         + d_model * H + d_cov * H + 2 * H * H + H * d_out_pad) \
        + 2 * d_model
    cost = pl.CostEstimate(
        flops=int(M_pad * flops_per_row),
        transcendentals=0,
        bytes_accessed=int(M_pad * row_w * 4 + M_pad * d_out_pad * 4 + weight_bytes),
    )

    out = pl.pallas_call(
        functools.partial(_fused_forward_kernel, d_cov=d_cov),
        out_shape=jax.ShapeDtypeStruct((M_pad, d_out_pad), jnp.float32),
        grid_spec=pltpu.PrefetchScalarGridSpec(
            num_scalar_prefetch=0,
            grid=(M_pad // tm_eff,),
            in_specs=[row_spec] + [const_spec(w) for w in weights],
            out_specs=out_spec,
        ),
        compiler_params=pltpu.CompilerParams(
            dimension_semantics=("parallel",),
            vmem_limit_bytes=vmem_limit),
        cost_estimate=cost,
    )(packed, *weights)

    return out[:M, :d_out]


# ---------------------------------------------------------------------------
# Deterministic parameter initialization (shapes follow the nn.Module __init__)
# Linear weights are stored already transposed to (in, out): y = x @ W + b.
# ---------------------------------------------------------------------------
def init_params(key, d_model, covariate_dim, output_dim, hidden_dim):
    keys = jax.random.split(key, 16)
    s = 0.02

    def lin(k, din, dout):
        kw, kb = jax.random.split(k)
        return (s * jax.random.normal(kw, (din, dout), jnp.float32),
                s * jax.random.normal(kb, (1, dout), jnp.float32))

    # InputInjectionBlock: W_emb(d_model->H), W_cov(cov->H), FFN(2H->H->d_model)
    iib = {}
    iib["w_a"], iib["b_a"] = lin(keys[0], d_model, hidden_dim)
    iib["w_c"], iib["b_c"] = lin(keys[1], covariate_dim, hidden_dim)
    iib["w1"], iib["b1"] = lin(keys[2], 2 * hidden_dim, hidden_dim)
    iib["w2"], iib["b2"] = lin(keys[3], hidden_dim, d_model)

    # OutputInjectionBlock: W_out(d_model->H), W_cov(cov->H), FFN(2H->H->output_dim)
    oib = {}
    oib["w_a"], oib["b_a"] = lin(keys[4], d_model, hidden_dim)
    oib["w_c"], oib["b_c"] = lin(keys[5], covariate_dim, hidden_dim)
    oib["w1"], oib["b1"] = lin(keys[6], 2 * hidden_dim, hidden_dim)
    oib["w2"], oib["b2"] = lin(keys[7], hidden_dim, output_dim)
    # (forecasting_head exists in the module but is unused in forward; omitted)

    # Frozen base-model stub: scalar-value embedder + linear head
    base = {}
    base["embed_w"] = s * jax.random.normal(keys[8], (1, d_model), jnp.float32)
    base["embed_b"] = s * jax.random.normal(keys[9], (1, d_model), jnp.float32)
    base["head_w"], base["head_b"] = lin(keys[10], d_model, output_dim)

    return {"iib": iib, "oib": oib, "base": base}


# ---------------------------------------------------------------------------
# AdaptedXModel.forward
# ---------------------------------------------------------------------------
@jax.jit
def adapted_x_model_forward(input_data, labels, past_covariates,
                            future_covariates, params):
    B, T = input_data.shape
    d_out = params["base"]["head_w"].shape[-1]

    logits = fused_adapter_forward(
        input_data.reshape(B * T),
        past_covariates.reshape(B * T, -1),
        future_covariates.reshape(B * T, -1),
        params).reshape(B, T, d_out)

    # model_wrapper.compute_loss
    # TODO(synk): wrapper-specific loss not defined in the reference; use MSE vs labels.
    loss = jnp.mean((logits - labels) ** 2)
    return loss, logits


# ---------------------------------------------------------------------------
# Pure-JAX reference (compute_dtype=bf16 mirrors the kernel's MXU math exactly;
# compute_dtype=f32 is the full-precision module semantics).
# ---------------------------------------------------------------------------
def forward_ref(input_data, labels, past_cov, future_cov, params,
                compute_dtype=jnp.float32):
    f32 = jnp.float32

    def dot(x, w):
        return jnp.dot(x.astype(compute_dtype), w.astype(compute_dtype),
                       preferred_element_type=f32)

    def injection(x, cov, resid, p):
        a = jnp.maximum(dot(x, p["w_a"]) + p["b_a"], 0.0)
        c = jnp.maximum(dot(cov, p["w_c"]) + p["b_c"], 0.0)
        cat = jnp.concatenate([a, c], axis=-1)
        h = jnp.maximum(dot(cat, p["w1"]) + p["b1"], 0.0)
        return resid + dot(h, p["w2"]) + p["b2"]

    base = params["base"]
    emb = (input_data[..., None] * base["embed_w"][None] + base["embed_b"][None])
    hidden = injection(emb, past_cov, emb, params["iib"])
    logits = dot(hidden, base["head_w"]) + base["head_b"]
    logits = injection(hidden, future_cov, logits, params["oib"])
    loss = jnp.mean((logits - labels) ** 2)
    return loss, logits


if __name__ == "__main__":
    B, T = 2, 8
    d_model, covariate_dim, hidden_dim, output_dim = 32, 8, 32, 16

    key = jax.random.PRNGKey(0)
    k1, k2, k3, k4, kp = jax.random.split(key, 5)
    input_data = jax.random.normal(k1, (B, T), jnp.float32)
    labels = jax.random.normal(k2, (B, T, output_dim), jnp.float32)
    past_covariates = jax.random.normal(k3, (B, T, covariate_dim), jnp.float32)
    future_covariates = jax.random.normal(k4, (B, T, covariate_dim), jnp.float32)

    params = init_params(kp, d_model, covariate_dim, output_dim, hidden_dim)

    loss, logits = adapted_x_model_forward(
        input_data, labels, past_covariates, future_covariates, params)
    jax.block_until_ready((loss, logits))

    # Reference that mirrors the kernel's bf16-operand / f32-accumulate math.
    loss_bf, logits_bf = forward_ref(
        input_data, labels, past_covariates, future_covariates, params,
        compute_dtype=jnp.bfloat16)
    # Full-precision module semantics (loose sanity check on bf16 drift).
    loss_f32, logits_f32 = forward_ref(
        input_data, labels, past_covariates, future_covariates, params,
        compute_dtype=jnp.float32)

    assert logits.shape == (B, T, output_dim)
    assert jnp.allclose(logits, logits_bf, atol=1e-4, rtol=1e-3)
    assert jnp.allclose(loss, loss_bf, atol=1e-4, rtol=1e-3)
    assert jnp.allclose(logits, logits_f32, atol=5e-3, rtol=5e-2)
    assert jnp.allclose(loss, loss_f32, atol=5e-3, rtol=5e-2)

    print("KERNEL_OK")
</pallas_src>

<mosaic_0001>
module attributes {stable_mosaic.version = 11 : i64} {
  func.func @_fused_forward_kernel(%arg0: i32, %arg1: memref<8x17xf32, #tpu.memory_space<vmem>>, %arg2: memref<1x32xf32, #tpu.memory_space<vmem>>, %arg3: memref<1x32xf32, #tpu.memory_space<vmem>>, %arg4: memref<32x32xbf16, #tpu.memory_space<vmem>>, %arg5: memref<1x32xf32, #tpu.memory_space<vmem>>, %arg6: memref<8x32xbf16, #tpu.memory_space<vmem>>, %arg7: memref<1x32xf32, #tpu.memory_space<vmem>>, %arg8: memref<64x32xbf16, #tpu.memory_space<vmem>>, %arg9: memref<1x32xf32, #tpu.memory_space<vmem>>, %arg10: memref<32x32xbf16, #tpu.memory_space<vmem>>, %arg11: memref<1x32xf32, #tpu.memory_space<vmem>>, %arg12: memref<32x128xbf16, #tpu.memory_space<vmem>>, %arg13: memref<1x128xf32, #tpu.memory_space<vmem>>, %arg14: memref<32x32xbf16, #tpu.memory_space<vmem>>, %arg15: memref<1x32xf32, #tpu.memory_space<vmem>>, %arg16: memref<8x32xbf16, #tpu.memory_space<vmem>>, %arg17: memref<1x32xf32, #tpu.memory_space<vmem>>, %arg18: memref<64x32xbf16, #tpu.memory_space<vmem>>, %arg19: memref<1x32xf32, #tpu.memory_space<vmem>>, %arg20: memref<32x128xbf16, #tpu.memory_space<vmem>>, %arg21: memref<1x128xf32, #tpu.memory_space<vmem>>, %arg22: memref<8x128xf32, #tpu.memory_space<vmem>>) attributes {dimension_semantics = [#tpu.dimension_semantics<parallel>], iteration_bounds = array<i64: 2>, scalar_prefetch = 0 : i64, scratch_operands = 0 : i64, tpu.core_type = #tpu.core_type<tc>, window_params = [{transform_indices = @transform_0, window_bounds = array<i64: 8, 17>}, {pipeline_mode = #tpu.pipeline_mode<synchronous>, transform_indices = @transform_1, window_bounds = array<i64: 1, 32>}, {pipeline_mode = #tpu.pipeline_mode<synchronous>, transform_indices = @transform_2, window_bounds = array<i64: 1, 32>}, {pipeline_mode = #tpu.pipeline_mode<synchronous>, transform_indices = @transform_3, window_bounds = array<i64: 32, 32>}, {pipeline_mode = #tpu.pipeline_mode<synchronous>, transform_indices = @transform_4, window_bounds = array<i64: 1, 32>}, {pipeline_mode = #tpu.pipeline_mode<synchronous>, transform_indices = @transform_5, window_bounds = array<i64: 8, 32>}, {pipeline_mode = #tpu.pipeline_mode<synchronous>, transform_indices = @transform_6, window_bounds = array<i64: 1, 32>}, {pipeline_mode = #tpu.pipeline_mode<synchronous>, transform_indices = @transform_7, window_bounds = array<i64: 64, 32>}, {pipeline_mode = #tpu.pipeline_mode<synchronous>, transform_indices = @transform_8, window_bounds = array<i64: 1, 32>}, {pipeline_mode = #tpu.pipeline_mode<synchronous>, transform_indices = @transform_9, window_bounds = array<i64: 32, 32>}, {pipeline_mode = #tpu.pipeline_mode<synchronous>, transform_indices = @transform_10, window_bounds = array<i64: 1, 32>}, {pipeline_mode = #tpu.pipeline_mode<synchronous>, transform_indices = @transform_11, window_bounds = array<i64: 32, 128>}, {pipeline_mode = #tpu.pipeline_mode<synchronous>, transform_indices = @transform_12, window_bounds = array<i64: 1, 128>}, {pipeline_mode = #tpu.pipeline_mode<synchronous>, transform_indices = @transform_13, window_bounds = array<i64: 32, 32>}, {pipeline_mode = #tpu.pipeline_mode<synchronous>, transform_indices = @transform_14, window_bounds = array<i64: 1, 32>}, {pipeline_mode = #tpu.pipeline_mode<synchronous>, transform_indices = @transform_15, window_bounds = array<i64: 8, 32>}, {pipeline_mode = #tpu.pipeline_mode<synchronous>, transform_indices = @transform_16, window_bounds = array<i64: 1, 32>}, {pipeline_mode = #tpu.pipeline_mode<synchronous>, transform_indices = @transform_17, window_bounds = array<i64: 64, 32>}, {pipeline_mode = #tpu.pipeline_mode<synchronous>, transform_indices = @transform_18, window_bounds = array<i64: 1, 32>}, {pipeline_mode = #tpu.pipeline_mode<synchronous>, transform_indices = @transform_19, window_bounds = array<i64: 32, 128>}, {pipeline_mode = #tpu.pipeline_mode<synchronous>, transform_indices = @transform_20, window_bounds = array<i64: 1, 128>}, {transform_indices = @transform_21, window_bounds = array<i64: 8, 128>}]} {
    %c0 = arith.constant 0 : index
    %c0_0 = arith.constant 0 : index
    %0 = vector.load %arg1[%c0, %c0_0] : memref<8x17xf32, #tpu.memory_space<vmem>>, vector<8x17xf32>
    %1 = vector.extract_strided_slice %0 {offsets = [0, 0], sizes = [8, 8], strides = [1, 1]} : vector<8x17xf32> to vector<8x8xf32>
    %2 = vector.extract_strided_slice %0 {offsets = [0, 8], sizes = [8, 8], strides = [1, 1]} : vector<8x17xf32> to vector<8x8xf32>
    %3 = vector.extract_strided_slice %0 {offsets = [0, 16], sizes = [8, 1], strides = [1, 1]} : vector<8x17xf32> to vector<8x1xf32>
    %c0_1 = arith.constant 0 : index
    %c0_2 = arith.constant 0 : index
    %4 = vector.load %arg2[%c0_1, %c0_2] : memref<1x32xf32, #tpu.memory_space<vmem>>, vector<1x32xf32>
    %5 = vector.broadcast %3 : vector<8x1xf32> to vector<8x32xf32>
    %6 = vector.broadcast %4 : vector<1x32xf32> to vector<8x32xf32>
    %7 = arith.mulf %5, %6 : vector<8x32xf32>
    %c0_3 = arith.constant 0 : index
    %c0_4 = arith.constant 0 : index
    %8 = vector.load %arg3[%c0_3, %c0_4] : memref<1x32xf32, #tpu.memory_space<vmem>>, vector<1x32xf32>
    %9 = vector.broadcast %8 : vector<1x32xf32> to vector<8x32xf32>
    %10 = arith.addf %7, %9 : vector<8x32xf32>
    %11 = arith.truncf %10 : vector<8x32xf32> to vector<8x32xbf16>
    %c0_5 = arith.constant 0 : index
    %c0_6 = arith.constant 0 : index
    %12 = vector.load %arg4[%c0_5, %c0_6] : memref<32x32xbf16, #tpu.memory_space<vmem>>, vector<32x32xbf16>
    %cst = arith.constant dense<0.000000e+00> : vector<8x32xf32>
    %13 = tpu.matmul %11, %12, %cst {dimension_numbers = #tpu.dot_dimension_numbers<[1], [0], [0], [1], [0, 0, 1, 1], [], []>} : vector<8x32xbf16>, vector<32x32xbf16>, vector<8x32xf32> -> vector<8x32xf32>
    %c0_7 = arith.constant 0 : index
    %c0_8 = arith.constant 0 : index
    %14 = vector.load %arg5[%c0_7, %c0_8] : memref<1x32xf32, #tpu.memory_space<vmem>>, vector<1x32xf32>
    %15 = vector.broadcast %14 : vector<1x32xf32> to vector<8x32xf32>
    %16 = arith.addf %13, %15 : vector<8x32xf32>
    %cst_9 = arith.constant 0.000000e+00 : f32
    %17 = vector.broadcast %cst_9 : f32 to vector<8x32xf32>
    %18 = arith.maximumf %16, %17 : vector<8x32xf32>
    %19 = arith.truncf %1 : vector<8x8xf32> to vector<8x8xbf16>
    %c0_10 = arith.constant 0 : index
    %c0_11 = arith.constant 0 : index
    %20 = vector.load %arg6[%c0_10, %c0_11] : memref<8x32xbf16, #tpu.memory_space<vmem>>, vector<8x32xbf16>
    %cst_12 = arith.constant dense<0.000000e+00> : vector<8x32xf32>
    %21 = tpu.matmul %19, %20, %cst_12 {dimension_numbers = #tpu.dot_dimension_numbers<[1], [0], [0], [1], [0, 0, 1, 1], [], []>} : vector<8x8xbf16>, vector<8x32xbf16>, vector<8x32xf32> -> vector<8x32xf32>
    %c0_13 = arith.constant 0 : index
    %c0_14 = arith.constant 0 : index
    %22 = vector.load %arg7[%c0_13, %c0_14] : memref<1x32xf32, #tpu.memory_space<vmem>>, vector<1x32xf32>
    %23 = vector.broadcast %22 : vector<1x32xf32> to vector<8x32xf32>
    %24 = arith.addf %21, %23 : vector<8x32xf32>
    %cst_15 = arith.constant 0.000000e+00 : f32
    %25 = vector.broadcast %cst_15 : f32 to vector<8x32xf32>
    %26 = arith.maximumf %24, %25 : vector<8x32xf32>
    %27 = tpu.concatenate %18, %26 in 1 : vector<8x32xf32>, vector<8x32xf32> -> vector<8x64xf32>
    %28 = arith.truncf %27 : vector<8x64xf32> to vector<8x64xbf16>
    %c0_16 = arith.constant 0 : index
    %c0_17 = arith.constant 0 : index
    %29 = vector.load %arg8[%c0_16, %c0_17] : memref<64x32xbf16, #tpu.memory_space<vmem>>, vector<64x32xbf16>
    %cst_18 = arith.constant dense<0.000000e+00> : vector<8x32xf32>
    %30 = tpu.matmul %28, %29, %cst_18 {dimension_numbers = #tpu.dot_dimension_numbers<[1], [0], [0], [1], [0, 0, 1, 1], [], []>} : vector<8x64xbf16>, vector<64x32xbf16>, vector<8x32xf32> -> vector<8x32xf32>
    %c0_19 = arith.constant 0 : index
    %c0_20 = arith.constant 0 : index
    %31 = vector.load %arg9[%c0_19, %c0_20] : memref<1x32xf32, #tpu.memory_space<vmem>>, vector<1x32xf32>
    %32 = vector.broadcast %31 : vector<1x32xf32> to vector<8x32xf32>
    %33 = arith.addf %30, %32 : vector<8x32xf32>
    %cst_21 = arith.constant 0.000000e+00 : f32
    %34 = vector.broadcast %cst_21 : f32 to vector<8x32xf32>
    %35 = arith.maximumf %33, %34 : vector<8x32xf32>
    %36 = arith.truncf %35 : vector<8x32xf32> to vector<8x32xbf16>
    %c0_22 = arith.constant 0 : index
    %c0_23 = arith.constant 0 : index
    %37 = vector.load %arg10[%c0_22, %c0_23] : memref<32x32xbf16, #tpu.memory_space<vmem>>, vector<32x32xbf16>
    %cst_24 = arith.constant dense<0.000000e+00> : vector<8x32xf32>
    %38 = tpu.matmul %36, %37, %cst_24 {dimension_numbers = #tpu.dot_dimension_numbers<[1], [0], [0], [1], [0, 0, 1, 1], [], []>} : vector<8x32xbf16>, vector<32x32xbf16>, vector<8x32xf32> -> vector<8x32xf32>
    %39 = arith.addf %10, %38 : vector<8x32xf32>
    %c0_25 = arith.constant 0 : index
    %c0_26 = arith.constant 0 : index
    %40 = vector.load %arg11[%c0_25, %c0_26] : memref<1x32xf32, #tpu.memory_space<vmem>>, vector<1x32xf32>
    %41 = vector.broadcast %40 : vector<1x32xf32> to vector<8x32xf32>
    %42 = arith.addf %39, %41 : vector<8x32xf32>
    %43 = arith.truncf %42 : vector<8x32xf32> to vector<8x32xbf16>
    %c0_27 = arith.constant 0 : index
    %c0_28 = arith.constant 0 : index
    %44 = vector.load %arg12[%c0_27, %c0_28] : memref<32x128xbf16, #tpu.memory_space<vmem>>, vector<32x128xbf16>
    %cst_29 = arith.constant dense<0.000000e+00> : vector<8x128xf32>
    %45 = tpu.matmul %43, %44, %cst_29 {dimension_numbers = #tpu.dot_dimension_numbers<[1], [0], [0], [1], [0, 0, 1, 1], [], []>} : vector<8x32xbf16>, vector<32x128xbf16>, vector<8x128xf32> -> vector<8x128xf32>
    %c0_30 = arith.constant 0 : index
    %c0_31 = arith.constant 0 : index
    %46 = vector.load %arg13[%c0_30, %c0_31] : memref<1x128xf32, #tpu.memory_space<vmem>>, vector<1x128xf32>
    %47 = vector.broadcast %46 : vector<1x128xf32> to vector<8x128xf32>
    %48 = arith.addf %45, %47 : vector<8x128xf32>
    %c0_32 = arith.constant 0 : index
    %c0_33 = arith.constant 0 : index
    %49 = vector.load %arg14[%c0_32, %c0_33] : memref<32x32xbf16, #tpu.memory_space<vmem>>, vector<32x32xbf16>
    %cst_34 = arith.constant dense<0.000000e+00> : vector<8x32xf32>
    %50 = tpu.matmul %43, %49, %cst_34 {dimension_numbers = #tpu.dot_dimension_numbers<[1], [0], [0], [1], [0, 0, 1, 1], [], []>} : vector<8x32xbf16>, vector<32x32xbf16>, vector<8x32xf32> -> vector<8x32xf32>
    %c0_35 = arith.constant 0 : index
    %c0_36 = arith.constant 0 : index
    %51 = vector.load %arg15[%c0_35, %c0_36] : memref<1x32xf32, #tpu.memory_space<vmem>>, vector<1x32xf32>
    %52 = vector.broadcast %51 : vector<1x32xf32> to vector<8x32xf32>
    %53 = arith.addf %50, %52 : vector<8x32xf32>
    %cst_37 = arith.constant 0.000000e+00 : f32
    %54 = vector.broadcast %cst_37 : f32 to vector<8x32xf32>
    %55 = arith.maximumf %53, %54 : vector<8x32xf32>
    %56 = arith.truncf %2 : vector<8x8xf32> to vector<8x8xbf16>
    %c0_38 = arith.constant 0 : index
    %c0_39 = arith.constant 0 : index
    %57 = vector.load %arg16[%c0_38, %c0_39] : memref<8x32xbf16, #tpu.memory_space<vmem>>, vector<8x32xbf16>
    %cst_40 = arith.constant dense<0.000000e+00> : vector<8x32xf32>
    %58 = tpu.matmul %56, %57, %cst_40 {dimension_numbers = #tpu.dot_dimension_numbers<[1], [0], [0], [1], [0, 0, 1, 1], [], []>} : vector<8x8xbf16>, vector<8x32xbf16>, vector<8x32xf32> -> vector<8x32xf32>
    %c0_41 = arith.constant 0 : index
    %c0_42 = arith.constant 0 : index
    %59 = vector.load %arg17[%c0_41, %c0_42] : memref<1x32xf32, #tpu.memory_space<vmem>>, vector<1x32xf32>
    %60 = vector.broadcast %59 : vector<1x32xf32> to vector<8x32xf32>
    %61 = arith.addf %58, %60 : vector<8x32xf32>
    %cst_43 = arith.constant 0.000000e+00 : f32
    %62 = vector.broadcast %cst_43 : f32 to vector<8x32xf32>
    %63 = arith.maximumf %61, %62 : vector<8x32xf32>
    %64 = tpu.concatenate %55, %63 in 1 : vector<8x32xf32>, vector<8x32xf32> -> vector<8x64xf32>
    %65 = arith.truncf %64 : vector<8x64xf32> to vector<8x64xbf16>
    %c0_44 = arith.constant 0 : index
    %c0_45 = arith.constant 0 : index
    %66 = vector.load %arg18[%c0_44, %c0_45] : memref<64x32xbf16, #tpu.memory_space<vmem>>, vector<64x32xbf16>
    %cst_46 = arith.constant dense<0.000000e+00> : vector<8x32xf32>
    %67 = tpu.matmul %65, %66, %cst_46 {dimension_numbers = #tpu.dot_dimension_numbers<[1], [0], [0], [1], [0, 0, 1, 1], [], []>} : vector<8x64xbf16>, vector<64x32xbf16>, vector<8x32xf32> -> vector<8x32xf32>
    %c0_47 = arith.constant 0 : index
    %c0_48 = arith.constant 0 : index
    %68 = vector.load %arg19[%c0_47, %c0_48] : memref<1x32xf32, #tpu.memory_space<vmem>>, vector<1x32xf32>
    %69 = vector.broadcast %68 : vector<1x32xf32> to vector<8x32xf32>
    %70 = arith.addf %67, %69 : vector<8x32xf32>
    %cst_49 = arith.constant 0.000000e+00 : f32
    %71 = vector.broadcast %cst_49 : f32 to vector<8x32xf32>
    %72 = arith.maximumf %70, %71 : vector<8x32xf32>
    %73 = arith.truncf %72 : vector<8x32xf32> to vector<8x32xbf16>
    %c0_50 = arith.constant 0 : index
    %c0_51 = arith.constant 0 : index
    %74 = vector.load %arg20[%c0_50, %c0_51] : memref<32x128xbf16, #tpu.memory_space<vmem>>, vector<32x128xbf16>
    %cst_52 = arith.constant dense<0.000000e+00> : vector<8x128xf32>
    %75 = tpu.matmul %73, %74, %cst_52 {dimension_numbers = #tpu.dot_dimension_numbers<[1], [0], [0], [1], [0, 0, 1, 1], [], []>} : vector<8x32xbf16>, vector<32x128xbf16>, vector<8x128xf32> -> vector<8x128xf32>
    %76 = arith.addf %48, %75 : vector<8x128xf32>
    %c0_53 = arith.constant 0 : index
    %c0_54 = arith.constant 0 : index
    %77 = vector.load %arg21[%c0_53, %c0_54] : memref<1x128xf32, #tpu.memory_space<vmem>>, vector<1x128xf32>
    %78 = vector.broadcast %77 : vector<1x128xf32> to vector<8x128xf32>
    %79 = arith.addf %76, %78 : vector<8x128xf32>
    %c0_55 = arith.constant 0 : index
    %c0_56 = arith.constant 0 : index
    %80 = vector.load %arg22[%c0_55, %c0_56] : memref<8x128xf32, #tpu.memory_space<vmem>>, vector<8x128xf32>
    tpu.vector_store %arg22[%c0_55, %c0_56], %79 {strides = array<i32>} : memref<8x128xf32, #tpu.memory_space<vmem>>, vector<8x128xf32>,
    return
  }
  func.func @transform_0(%arg0: i32) -> (i32, i32) {
    %c0_i32 = arith.constant 0 : i32
    %c0_i32_0 = arith.constant 0 : i32
    return %arg0, %c0_i32 : i32, i32
  }
  func.func @transform_1(%arg0: i32) -> (i32, i32) {
    %c0_i32 = arith.constant 0 : i32
    %c0_i32_0 = arith.constant 0 : i32
    %c0_i32_1 = arith.constant 0 : i32
    return %c0_i32, %c0_i32_0 : i32, i32
  }
  func.func @transform_2(%arg0: i32) -> (i32, i32) {
    %c0_i32 = arith.constant 0 : i32
    %c0_i32_0 = arith.constant 0 : i32
    %c0_i32_1 = arith.constant 0 : i32
    return %c0_i32, %c0_i32_0 : i32, i32
  }
  func.func @transform_3(%arg0: i32) -> (i32, i32) {
    %c0_i32 = arith.constant 0 : i32
    %c0_i32_0 = arith.constant 0 : i32
    %c0_i32_1 = arith.constant 0 : i32
    return %c0_i32, %c0_i32_0 : i32, i32
  }
  func.func @transform_4(%arg0: i32) -> (i32, i32) {
    %c0_i32 = arith.constant 0 : i32
    %c0_i32_0 = arith.constant 0 : i32
    %c0_i32_1 = arith.constant 0 : i32
    return %c0_i32, %c0_i32_0 : i32, i32
  }
  func.func @transform_5(%arg0: i32) -> (i32, i32) {
    %c0_i32 = arith.constant 0 : i32
    %c0_i32_0 = arith.constant 0 : i32
    %c0_i32_1 = arith.constant 0 : i32
    return %c0_i32, %c0_i32_0 : i32, i32
  }
  func.func @transform_6(%arg0: i32) -> (i32, i32) {
    %c0_i32 = arith.constant 0 : i32
    %c0_i32_0 = arith.constant 0 : i32
    %c0_i32_1 = arith.constant 0 : i32
    return %c0_i32, %c0_i32_0 : i32, i32
  }
  func.func @transform_7(%arg0: i32) -> (i32, i32) {
    %c0_i32 = arith.constant 0 : i32
    %c0_i32_0 = arith.constant 0 : i32
    %c0_i32_1 = arith.constant 0 : i32
    return %c0_i32, %c0_i32_0 : i32, i32
  }
  func.func @transform_8(%arg0: i32) -> (i32, i32) {
    %c0_i32 = arith.constant 0 : i32
    %c0_i32_0 = arith.constant 0 : i32
    %c0_i32_1 = arith.constant 0 : i32
    return %c0_i32, %c0_i32_0 : i32, i32
  }
  func.func @transform_9(%arg0: i32) -> (i32, i32) {
    %c0_i32 = arith.constant 0 : i32
    %c0_i32_0 = arith.constant 0 : i32
    %c0_i32_1 = arith.constant 0 : i32
    return %c0_i32, %c0_i32_0 : i32, i32
  }
  func.func @transform_10(%arg0: i32) -> (i32, i32) {
    %c0_i32 = arith.constant 0 : i32
    %c0_i32_0 = arith.constant 0 : i32
    %c0_i32_1 = arith.constant 0 : i32
    return %c0_i32, %c0_i32_0 : i32, i32
  }
  func.func @transform_11(%arg0: i32) -> (i32, i32) {
    %c0_i32 = arith.constant 0 : i32
    %c0_i32_0 = arith.constant 0 : i32
    %c0_i32_1 = arith.constant 0 : i32
    return %c0_i32, %c0_i32_0 : i32, i32
  }
  func.func @transform_12(%arg0: i32) -> (i32, i32) {
    %c0_i32 = arith.constant 0 : i32
    %c0_i32_0 = arith.constant 0 : i32
    %c0_i32_1 = arith.constant 0 : i32
    return %c0_i32, %c0_i32_0 : i32, i32
  }
  func.func @transform_13(%arg0: i32) -> (i32, i32) {
    %c0_i32 = arith.constant 0 : i32
    %c0_i32_0 = arith.constant 0 : i32
    %c0_i32_1 = arith.constant 0 : i32
    return %c0_i32, %c0_i32_0 : i32, i32
  }
  func.func @transform_14(%arg0: i32) -> (i32, i32) {
    %c0_i32 = arith.constant 0 : i32
    %c0_i32_0 = arith.constant 0 : i32
    %c0_i32_1 = arith.constant 0 : i32
    return %c0_i32, %c0_i32_0 : i32, i32
  }
  func.func @transform_15(%arg0: i32) -> (i32, i32) {
    %c0_i32 = arith.constant 0 : i32
    %c0_i32_0 = arith.constant 0 : i32
    %c0_i32_1 = arith.constant 0 : i32
    return %c0_i32, %c0_i32_0 : i32, i32
  }
  func.func @transform_16(%arg0: i32) -> (i32, i32) {
    %c0_i32 = arith.constant 0 : i32
    %c0_i32_0 = arith.constant 0 : i32
    %c0_i32_1 = arith.constant 0 : i32
    return %c0_i32, %c0_i32_0 : i32, i32
  }
  func.func @transform_17(%arg0: i32) -> (i32, i32) {
    %c0_i32 = arith.constant 0 : i32
    %c0_i32_0 = arith.constant 0 : i32
    %c0_i32_1 = arith.constant 0 : i32
    return %c0_i32, %c0_i32_0 : i32, i32
  }
  func.func @transform_18(%arg0: i32) -> (i32, i32) {
    %c0_i32 = arith.constant 0 : i32
    %c0_i32_0 = arith.constant 0 : i32
    %c0_i32_1 = arith.constant 0 : i32
    return %c0_i32, %c0_i32_0 : i32, i32
  }
  func.func @transform_19(%arg0: i32) -> (i32, i32) {
    %c0_i32 = arith.constant 0 : i32
    %c0_i32_0 = arith.constant 0 : i32
    %c0_i32_1 = arith.constant 0 : i32
    return %c0_i32, %c0_i32_0 : i32, i32
  }
  func.func @transform_20(%arg0: i32) -> (i32, i32) {
    %c0_i32 = arith.constant 0 : i32
    %c0_i32_0 = arith.constant 0 : i32
    %c0_i32_1 = arith.constant 0 : i32
    return %c0_i32, %c0_i32_0 : i32, i32
  }
  func.func @transform_21(%arg0: i32) -> (i32, i32) {
    %c0_i32 = arith.constant 0 : i32
    %c0_i32_0 = arith.constant 0 : i32
    return %arg0, %c0_i32 : i32, i32
  }
}

</mosaic_0001>

<llo_original>
// kernel: adapted_x_model_forward.1
$region0: #{adapted_x_model_forward.1}
  #allocation0 [shape = 'u32[]', space=smem, size = 0x4, offset = 0x4, fixed_abs, tag = 'smem constant byte address 0x4 - core index']
  #allocation1 [shape = 'u32[144,128]{1,0:T(1,128)}', space=vmem, size = 0x12000, scoped, tag = 'internal scratch']
  %s0 = inlined_call_operand.vmem [shape: f32[16,17], index: 0, kind: input, shape index: {}]
  %s1 = inlined_call_operand.vmem [shape: f32[1,32], index: 1, kind: input, shape index: {}]
  %s2 = inlined_call_operand.vmem [shape: f32[1,32], index: 2, kind: input, shape index: {}]
  %s3 = inlined_call_operand.vmem [shape: bf16[32,32], index: 3, kind: input, shape index: {}]
  %s4 = inlined_call_operand.vmem [shape: f32[1,32], index: 4, kind: input, shape index: {}]
  %s5 = inlined_call_operand.vmem [shape: bf16[8,32], index: 5, kind: input, shape index: {}]
  %s6 = inlined_call_operand.vmem [shape: f32[1,32], index: 6, kind: input, shape index: {}]
  %s7 = inlined_call_operand.vmem [shape: bf16[64,32], index: 7, kind: input, shape index: {}]
  %s8 = inlined_call_operand.vmem [shape: f32[1,32], index: 8, kind: input, shape index: {}]
  %s9 = inlined_call_operand.vmem [shape: bf16[32,32], index: 9, kind: input, shape index: {}]
  %s10 = inlined_call_operand.vmem [shape: f32[1,32], index: 10, kind: input, shape index: {}]
  %s11 = inlined_call_operand.vmem [shape: bf16[32,128], index: 11, kind: input, shape index: {}]
  %s12 = inlined_call_operand.vmem [shape: f32[1,128], index: 12, kind: input, shape index: {}]
  %s13 = inlined_call_operand.vmem [shape: bf16[32,32], index: 13, kind: input, shape index: {}]
  %s14 = inlined_call_operand.vmem [shape: f32[1,32], index: 14, kind: input, shape index: {}]
  %s15 = inlined_call_operand.vmem [shape: bf16[8,32], index: 15, kind: input, shape index: {}]
  %s16 = inlined_call_operand.vmem [shape: f32[1,32], index: 16, kind: input, shape index: {}]
  %s17 = inlined_call_operand.vmem [shape: bf16[64,32], index: 17, kind: input, shape index: {}]
  %s18 = inlined_call_operand.vmem [shape: f32[1,32], index: 18, kind: input, shape index: {}]
  %s19 = inlined_call_operand.vmem [shape: bf16[32,128], index: 19, kind: input, shape index: {}]
  %s20 = inlined_call_operand.vmem [shape: f32[1,128], index: 20, kind: input, shape index: {}]
  %s21 = inlined_call_operand.vmem [shape: f32[16,128], index: 21, kind: output, shape index: {}]
  %s22 = sld [smem:[#allocation0]]
  $region117: #{adapted_x_model_forward.1} parent=0
    _
  %s24 = ssub.s32 1, %s22
  %s25 = scalar_select 0, %s24, %s22
  loop: start=0, step=1, limit=4
  $region2: #{adapted_x_model_forward.1} parent=0 // loop_pre_header
    _
  $region3: #{adapted_x_model_forward.1} parent=0 // loop_header
    %s27 = sphi 0, %s31
    %p28 = scmp.ge.s32.totalorder %s27, 4
    %s37 = sphi 0, %s39
    %s40 = sphi 0, %s37
    %s41 = sphi 0, %s40
    %s57 = sphi 0, %s41
    %s61 = sphi 0, %s61
    %s63 = sphi 0, %s61
    %s64 = sphi 0, %s63
    %s78 = sphi 0, %s64
    %s82 = sphi 0, %s82
    %s84 = sphi 0, %s82
    %s85 = sphi 0, %s84
    %s99 = sphi 0, %s85
    %s103 = sphi 0, %s103
    %s105 = sphi 0, %s103
    %s106 = sphi 0, %s105
    %s120 = sphi 0, %s106
    %s124 = sphi 0, %s124
    %s126 = sphi 0, %s124
    %s127 = sphi 0, %s126
    %s141 = sphi 0, %s127
    %s145 = sphi 0, %s145
    %s147 = sphi 0, %s145
    %s148 = sphi 0, %s147
    %s162 = sphi 0, %s148
    %s166 = sphi 0, %s166
    %s168 = sphi 0, %s166
    %s169 = sphi 0, %s168
    %s183 = sphi 0, %s169
    %s187 = sphi 0, %s187
    %s189 = sphi 0, %s187
    %s190 = sphi 0, %s189
    %s204 = sphi 0, %s190
    %s208 = sphi 0, %s208
    %s210 = sphi 0, %s208
    %s211 = sphi 0, %s210
    %s225 = sphi 0, %s211
    %s229 = sphi 0, %s229
    %s231 = sphi 0, %s229
    %s232 = sphi 0, %s231
    %s246 = sphi 0, %s232
    %s250 = sphi 0, %s250
    %s252 = sphi 0, %s250
    %s253 = sphi 0, %s252
    %s267 = sphi 0, %s253
    %s271 = sphi 0, %s271
    %s273 = sphi 0, %s271
    %s274 = sphi 0, %s273
    %s288 = sphi 0, %s274
    %s292 = sphi 0, %s292
    %s294 = sphi 0, %s292
    %s295 = sphi 0, %s294
    %s309 = sphi 0, %s295
    %s313 = sphi 0, %s313
    %s315 = sphi 0, %s313
    %s316 = sphi 0, %s315
    %s330 = sphi 0, %s316
    %s334 = sphi 0, %s334
    %s336 = sphi 0, %s334
    %s337 = sphi 0, %s336
    %s351 = sphi 0, %s337
    %s355 = sphi 0, %s355
    %s357 = sphi 0, %s355
    %s358 = sphi 0, %s357
    %s372 = sphi 0, %s358
    %s376 = sphi 0, %s376
    %s378 = sphi 0, %s376
    %s379 = sphi 0, %s378
    %s393 = sphi 0, %s379
    %s397 = sphi 0, %s397
    %s399 = sphi 0, %s397
    %s400 = sphi 0, %s399
    %s414 = sphi 0, %s400
    %s418 = sphi 0, %s418
    %s420 = sphi 0, %s418
    %s421 = sphi 0, %s420
    %s435 = sphi 0, %s421
    %s439 = sphi 0, %s439
    %s441 = sphi 0, %s439
    %s442 = sphi 0, %s441
    %s456 = sphi 0, %s442
    %s460 = sphi 0, %s460
    %s462 = sphi 0, %s460
    %s463 = sphi 0, %s462
    %s477 = sphi 0, %s463
    %s483 = sphi 0, %s485
    %s486 = sphi 0, %s483
    %s487 = sphi 0, %s486
    %s503 = sphi 0, %s487
  $region4: #{adapted_x_model_forward.1} parent=0 // loop_header_branch
    %30 = sbr.rel (%p28) target = $region8
  $region5: #{adapted_x_model_forward.1} parent=0 // loop_body
    %s32 = ssub.s32 %s27, 1
    %s33 = ssub.s32 %s27, 2
    %s34 = sadd.s32 %s27, 1
    %s35 = ssub.s32 %s27, %s34
    %p36 = scmp.eq.s32.totalorder %s35, 0
    %s38 = sadd.s32 %s37, 1
    %s39 = scalar_select %p36, %s37, %s38
    %p42 = pneg %p36
    %p43 = scmp.eq.s32.totalorder %s27, 1
    %p44 = por %p42, %p43
    %p45 = scmp.ne.s32.totalorder %s37, %s40
    %p46 = scmp.eq.s32.totalorder %s27, 0
    %p47 = por %p45, %p46
    %p48 = scmp.ne.s32.totalorder %s37, %s40
    %p49 = scmp.eq.s32.totalorder %s32, 1
    %p50 = por %p48, %p49
    %p51 = scmp.ne.s32.totalorder %s40, %s41
    %p52 = scmp.eq.s32.totalorder %s32, 0
    %p53 = por %p51, %p52
    %p54 = scmp.ne.s32.totalorder %s40, %s41
    %p55 = scmp.eq.s32.totalorder %s33, 1
    %p56 = por %p54, %p55
    %p58 = scmp.ne.s32.totalorder %s41, %s57
    %p59 = scmp.eq.s32.totalorder %s33, 0
    %p60 = por %p58, %p59
    %s62 = sadd.s32 %s61, 1
    %p65 = scmp.eq.s32.totalorder %s27, 1
    %p66 = scmp.ne.s32.totalorder %s61, %s63
    %p67 = scmp.eq.s32.totalorder %s27, 0
    %p68 = por %p66, %p67
    %p69 = scmp.ne.s32.totalorder %s61, %s63
    %p70 = scmp.eq.s32.totalorder %s32, 1
    %p71 = por %p69, %p70
    %p72 = scmp.ne.s32.totalorder %s63, %s64
    %p73 = scmp.eq.s32.totalorder %s32, 0
    %p74 = por %p72, %p73
    %p75 = scmp.ne.s32.totalorder %s63, %s64
    %p76 = scmp.eq.s32.totalorder %s33, 1
    %p77 = por %p75, %p76
    %p79 = scmp.ne.s32.totalorder %s64, %s78
    %p80 = scmp.eq.s32.totalorder %s33, 0
    %p81 = por %p79, %p80
    %s83 = sadd.s32 %s82, 1
    %p86 = scmp.eq.s32.totalorder %s27, 1
    %p87 = scmp.ne.s32.totalorder %s82, %s84
    %p88 = scmp.eq.s32.totalorder %s27, 0
    %p89 = por %p87, %p88
    %p90 = scmp.ne.s32.totalorder %s82, %s84
    %p91 = scmp.eq.s32.totalorder %s32, 1
    %p92 = por %p90, %p91
    %p93 = scmp.ne.s32.totalorder %s84, %s85
    %p94 = scmp.eq.s32.totalorder %s32, 0
    %p95 = por %p93, %p94
    %p96 = scmp.ne.s32.totalorder %s84, %s85
    %p97 = scmp.eq.s32.totalorder %s33, 1
    %p98 = por %p96, %p97
    %p100 = scmp.ne.s32.totalorder %s85, %s99
    %p101 = scmp.eq.s32.totalorder %s33, 0
    %p102 = por %p100, %p101
    %s104 = sadd.s32 %s103, 1
    %p107 = scmp.eq.s32.totalorder %s27, 1
    %p108 = scmp.ne.s32.totalorder %s103, %s105
    %p109 = scmp.eq.s32.totalorder %s27, 0
    %p110 = por %p108, %p109
    %p111 = scmp.ne.s32.totalorder %s103, %s105
    %p112 = scmp.eq.s32.totalorder %s32, 1
    %p113 = por %p111, %p112
    %p114 = scmp.ne.s32.totalorder %s105, %s106
    %p115 = scmp.eq.s32.totalorder %s32, 0
    %p116 = por %p114, %p115
    %p117 = scmp.ne.s32.totalorder %s105, %s106
    %p118 = scmp.eq.s32.totalorder %s33, 1
    %p119 = por %p117, %p118
    %p121 = scmp.ne.s32.totalorder %s106, %s120
    %p122 = scmp.eq.s32.totalorder %s33, 0
    %p123 = por %p121, %p122
    %s125 = sadd.s32 %s124, 1
    %p128 = scmp.eq.s32.totalorder %s27, 1
    %p129 = scmp.ne.s32.totalorder %s124, %s126
    %p130 = scmp.eq.s32.totalorder %s27, 0
    %p131 = por %p129, %p130
    %p132 = scmp.ne.s32.totalorder %s124, %s126
    %p133 = scmp.eq.s32.totalorder %s32, 1
    %p134 = por %p132, %p133
    %p135 = scmp.ne.s32.totalorder %s126, %s127
    %p136 = scmp.eq.s32.totalorder %s32, 0
    %p137 = por %p135, %p136
    %p138 = scmp.ne.s32.totalorder %s126, %s127
    %p139 = scmp.eq.s32.totalorder %s33, 1
    %p140 = por %p138, %p139
    %p142 = scmp.ne.s32.totalorder %s127, %s141
    %p143 = scmp.eq.s32.totalorder %s33, 0
    %p144 = por %p142, %p143
    %s146 = sadd.s32 %s145, 1
    %p149 = scmp.eq.s32.totalorder %s27, 1
    %p150 = scmp.ne.s32.totalorder %s145, %s147
    %p151 = scmp.eq.s32.totalorder %s27, 0
    %p152 = por %p150, %p151
    %p153 = scmp.ne.s32.totalorder %s145, %s147
    %p154 = scmp.eq.s32.totalorder %s32, 1
    %p155 = por %p153, %p154
    %p156 = scmp.ne.s32.totalorder %s147, %s148
    %p157 = scmp.eq.s32.totalorder %s32, 0
    %p158 = por %p156, %p157
    %p159 = scmp.ne.s32.totalorder %s147, %s148
    %p160 = scmp.eq.s32.totalorder %s33, 1
    %p161 = por %p159, %p160
    %p163 = scmp.ne.s32.totalorder %s148, %s162
    %p164 = scmp.eq.s32.totalorder %s33, 0
    %p165 = por %p163, %p164
    %s167 = sadd.s32 %s166, 1
    %p170 = scmp.eq.s32.totalorder %s27, 1
    %p171 = scmp.ne.s32.totalorder %s166, %s168
    %p172 = scmp.eq.s32.totalorder %s27, 0
    %p173 = por %p171, %p172
    %p174 = scmp.ne.s32.totalorder %s166, %s168
    %p175 = scmp.eq.s32.totalorder %s32, 1
    %p176 = por %p174, %p175
    %p177 = scmp.ne.s32.totalorder %s168, %s169
    %p178 = scmp.eq.s32.totalorder %s32, 0
    %p179 = por %p177, %p178
    %p180 = scmp.ne.s32.totalorder %s168, %s169
    %p181 = scmp.eq.s32.totalorder %s33, 1
    %p182 = por %p180, %p181
    %p184 = scmp.ne.s32.totalorder %s169, %s183
    %p185 = scmp.eq.s32.totalorder %s33, 0
    %p186 = por %p184, %p185
    %s188 = sadd.s32 %s187, 1
    %p191 = scmp.eq.s32.totalorder %s27, 1
    %p192 = scmp.ne.s32.totalorder %s187, %s189
    %p193 = scmp.eq.s32.totalorder %s27, 0
    %p194 = por %p192, %p193
    %p195 = scmp.ne.s32.totalorder %s187, %s189
    %p196 = scmp.eq.s32.totalorder %s32, 1
    %p197 = por %p195, %p196
    %p198 = scmp.ne.s32.totalorder %s189, %s190
    %p199 = scmp.eq.s32.totalorder %s32, 0
    %p200 = por %p198, %p199
    %p201 = scmp.ne.s32.totalorder %s189, %s190
    %p202 = scmp.eq.s32.totalorder %s33, 1
    %p203 = por %p201, %p202
    %p205 = scmp.ne.s32.totalorder %s190, %s204
    %p206 = scmp.eq.s32.totalorder %s33, 0
    %p207 = por %p205, %p206
    %s209 = sadd.s32 %s208, 1
    %p212 = scmp.eq.s32.totalorder %s27, 1
    %p213 = scmp.ne.s32.totalorder %s208, %s210
    %p214 = scmp.eq.s32.totalorder %s27, 0
    %p215 = por %p213, %p214
    %p216 = scmp.ne.s32.totalorder %s208, %s210
    %p217 = scmp.eq.s32.totalorder %s32, 1
    %p218 = por %p216, %p217
    %p219 = scmp.ne.s32.totalorder %s210, %s211
    %p220 = scmp.eq.s32.totalorder %s32, 0
    %p221 = por %p219, %p220
    %p222 = scmp.ne.s32.totalorder %s210, %s211
    %p223 = scmp.eq.s32.totalorder %s33, 1
    %p224 = por %p222, %p223
    %p226 = scmp.ne.s32.totalorder %s211, %s225
    %p227 = scmp.eq.s32.totalorder %s33, 0
    %p228 = por %p226, %p227
    %s230 = sadd.s32 %s229, 1
    %p233 = scmp.eq.s32.totalorder %s27, 1
    %p234 = scmp.ne.s32.totalorder %s229, %s231
    %p235 = scmp.eq.s32.totalorder %s27, 0
    %p236 = por %p234, %p235
    %p237 = scmp.ne.s32.totalorder %s229, %s231
    %p238 = scmp.eq.s32.totalorder %s32, 1
    %p239 = por %p237, %p238
    %p240 = scmp.ne.s32.totalorder %s231, %s232
    %p241 = scmp.eq.s32.totalorder %s32, 0
    %p242 = por %p240, %p241
    %p243 = scmp.ne.s32.totalorder %s231, %s232
    %p244 = scmp.eq.s32.totalorder %s33, 1
    %p245 = por %p243, %p244
    %p247 = scmp.ne.s32.totalorder %s232, %s246
    %p248 = scmp.eq.s32.totalorder %s33, 0
    %p249 = por %p247, %p248
    %s251 = sadd.s32 %s250, 1
    %p254 = scmp.eq.s32.totalorder %s27, 1
    %p255 = scmp.ne.s32.totalorder %s250, %s252
    %p256 = scmp.eq.s32.totalorder %s27, 0
    %p257 = por %p255, %p256
    %p258 = scmp.ne.s32.totalorder %s250, %s252
    %p259 = scmp.eq.s32.totalorder %s32, 1
    %p260 = por %p258, %p259
    %p261 = scmp.ne.s32.totalorder %s252, %s253
    %p262 = scmp.eq.s32.totalorder %s32, 0
    %p263 = por %p261, %p262
    %p264 = scmp.ne.s32.totalorder %s252, %s253
    %p265 = scmp.eq.s32.totalorder %s33, 1
    %p266 = por %p264, %p265
    %p268 = scmp.ne.s32.totalorder %s253, %s267
    %p269 = scmp.eq.s32.totalorder %s33, 0
    %p270 = por %p268, %p269
    %s272 = sadd.s32 %s271, 1
    %p275 = scmp.eq.s32.totalorder %s27, 1
    %p276 = scmp.ne.s32.totalorder %s271, %s273
    %p277 = scmp.eq.s32.totalorder %s27, 0
    %p278 = por %p276, %p277
    %p279 = scmp.ne.s32.totalorder %s271, %s273
    %p280 = scmp.eq.s32.totalorder %s32, 1
    %p281 = por %p279, %p280
    %p282 = scmp.ne.s32.totalorder %s273, %s274
    %p283 = scmp.eq.s32.totalorder %s32, 0
    %p284 = por %p282, %p283
    %p285 = scmp.ne.s32.totalorder %s273, %s274
    %p286 = scmp.eq.s32.totalorder %s33, 1
    %p287 = por %p285, %p286
    %p289 = scmp.ne.s32.totalorder %s274, %s288
    %p290 = scmp.eq.s32.totalorder %s33, 0
    %p291 = por %p289, %p290
    %s293 = sadd.s32 %s292, 1
    %p296 = scmp.eq.s32.totalorder %s27, 1
    %p297 = scmp.ne.s32.totalorder %s292, %s294
    %p298 = scmp.eq.s32.totalorder %s27, 0
    %p299 = por %p297, %p298
    %p300 = scmp.ne.s32.totalorder %s292, %s294
    %p301 = scmp.eq.s32.totalorder %s32, 1
    %p302 = por %p300, %p301
    %p303 = scmp.ne.s32.totalorder %s294, %s295
    %p304 = scmp.eq.s32.totalorder %s32, 0
    %p305 = por %p303, %p304
    %p306 = scmp.ne.s32.totalorder %s294, %s295
    %p307 = scmp.eq.s32.totalorder %s33, 1
    %p308 = por %p306, %p307
    %p310 = scmp.ne.s32.totalorder %s295, %s309
    %p311 = scmp.eq.s32.totalorder %s33, 0
    %p312 = por %p310, %p311
    %s314 = sadd.s32 %s313, 1
    %p317 = scmp.eq.s32.totalorder %s27, 1
    %p318 = scmp.ne.s32.totalorder %s313, %s315
    %p319 = scmp.eq.s32.totalorder %s27, 0
    %p320 = por %p318, %p319
    %p321 = scmp.ne.s32.totalorder %s313, %s315
    %p322 = scmp.eq.s32.totalorder %s32, 1
    %p323 = por %p321, %p322
    %p324 = scmp.ne.s32.totalorder %s315, %s316
    %p325 = scmp.eq.s32.totalorder %s32, 0
    %p326 = por %p324, %p325
    %p327 = scmp.ne.s32.totalorder %s315, %s316
    %p328 = scmp.eq.s32.totalorder %s33, 1
    %p329 = por %p327, %p328
    %p331 = scmp.ne.s32.totalorder %s316, %s330
    %p332 = scmp.eq.s32.totalorder %s33, 0
    %p333 = por %p331, %p332
    %s335 = sadd.s32 %s334, 1
    %p338 = scmp.eq.s32.totalorder %s27, 1
    %p339 = scmp.ne.s32.totalorder %s334, %s336
    %p340 = scmp.eq.s32.totalorder %s27, 0
    %p341 = por %p339, %p340
    %p342 = scmp.ne.s32.totalorder %s334, %s336
    %p343 = scmp.eq.s32.totalorder %s32, 1
    %p344 = por %p342, %p343
    %p345 = scmp.ne.s32.totalorder %s336, %s337
    %p346 = scmp.eq.s32.totalorder %s32, 0
    %p347 = por %p345, %p346
    %p348 = scmp.ne.s32.totalorder %s336, %s337
    %p349 = scmp.eq.s32.totalorder %s33, 1
    %p350 = por %p348, %p349
    %p352 = scmp.ne.s32.totalorder %s337, %s351
    %p353 = scmp.eq.s32.totalorder %s33, 0
    %p354 = por %p352, %p353
    %s356 = sadd.s32 %s355, 1
    %p359 = scmp.eq.s32.totalorder %s27, 1
    %p360 = scmp.ne.s32.totalorder %s355, %s357
    %p361 = scmp.eq.s32.totalorder %s27, 0
    %p362 = por %p360, %p361
    %p363 = scmp.ne.s32.totalorder %s355, %s357
    %p364 = scmp.eq.s32.totalorder %s32, 1
    %p365 = por %p363, %p364
    %p366 = scmp.ne.s32.totalorder %s357, %s358
    %p367 = scmp.eq.s32.totalorder %s32, 0
    %p368 = por %p366, %p367
    %p369 = scmp.ne.s32.totalorder %s357, %s358
    %p370 = scmp.eq.s32.totalorder %s33, 1
    %p371 = por %p369, %p370
    %p373 = scmp.ne.s32.totalorder %s358, %s372
    %p374 = scmp.eq.s32.totalorder %s33, 0
    %p375 = por %p373, %p374
    %s377 = sadd.s32 %s376, 1
    %p380 = scmp.eq.s32.totalorder %s27, 1
    %p381 = scmp.ne.s32.totalorder %s376, %s378
    %p382 = scmp.eq.s32.totalorder %s27, 0
    %p383 = por %p381, %p382
    %p384 = scmp.ne.s32.totalorder %s376, %s378
    %p385 = scmp.eq.s32.totalorder %s32, 1
    %p386 = por %p384, %p385
    %p387 = scmp.ne.s32.totalorder %s378, %s379
    %p388 = scmp.eq.s32.totalorder %s32, 0
    %p389 = por %p387, %p388
    %p390 = scmp.ne.s32.totalorder %s378, %s379
    %p391 = scmp.eq.s32.totalorder %s33, 1
    %p392 = por %p390, %p391
    %p394 = scmp.ne.s32.totalorder %s379, %s393
    %p395 = scmp.eq.s32.totalorder %s33, 0
    %p396 = por %p394, %p395
    %s398 = sadd.s32 %s397, 1
    %p401 = scmp.eq.s32.totalorder %s27, 1
    %p402 = scmp.ne.s32.totalorder %s397, %s399
    %p403 = scmp.eq.s32.totalorder %s27, 0
    %p404 = por %p402, %p403
    %p405 = scmp.ne.s32.totalorder %s397, %s399
    %p406 = scmp.eq.s32.totalorder %s32, 1
    %p407 = por %p405, %p406
    %p408 = scmp.ne.s32.totalorder %s399, %s400
    %p409 = scmp.eq.s32.totalorder %s32, 0
    %p410 = por %p408, %p409
    %p411 = scmp.ne.s32.totalorder %s399, %s400
    %p412 = scmp.eq.s32.totalorder %s33, 1
    %p413 = por %p411, %p412
    %p415 = scmp.ne.s32.totalorder %s400, %s414
    %p416 = scmp.eq.s32.totalorder %s33, 0
    %p417 = por %p415, %p416
    %s419 = sadd.s32 %s418, 1
    %p422 = scmp.eq.s32.totalorder %s27, 1
    %p423 = scmp.ne.s32.totalorder %s418, %s420
    %p424 = scmp.eq.s32.totalorder %s27, 0
    %p425 = por %p423, %p424
    %p426 = scmp.ne.s32.totalorder %s418, %s420
    %p427 = scmp.eq.s32.totalorder %s32, 1
    %p428 = por %p426, %p427
    %p429 = scmp.ne.s32.totalorder %s420, %s421
    %p430 = scmp.eq.s32.totalorder %s32, 0
    %p431 = por %p429, %p430
    %p432 = scmp.ne.s32.totalorder %s420, %s421
    %p433 = scmp.eq.s32.totalorder %s33, 1
    %p434 = por %p432, %p433
    %p436 = scmp.ne.s32.totalorder %s421, %s435
    %p437 = scmp.eq.s32.totalorder %s33, 0
    %p438 = por %p436, %p437
    %s440 = sadd.s32 %s439, 1
    %p443 = scmp.eq.s32.totalorder %s27, 1
    %p444 = scmp.ne.s32.totalorder %s439, %s441
    %p445 = scmp.eq.s32.totalorder %s27, 0
    %p446 = por %p444, %p445
    %p447 = scmp.ne.s32.totalorder %s439, %s441
    %p448 = scmp.eq.s32.totalorder %s32, 1
    %p449 = por %p447, %p448
    %p450 = scmp.ne.s32.totalorder %s441, %s442
    %p451 = scmp.eq.s32.totalorder %s32, 0
    %p452 = por %p450, %p451
    %p453 = scmp.ne.s32.totalorder %s441, %s442
    %p454 = scmp.eq.s32.totalorder %s33, 1
    %p455 = por %p453, %p454
    %p457 = scmp.ne.s32.totalorder %s442, %s456
    %p458 = scmp.eq.s32.totalorder %s33, 0
    %p459 = por %p457, %p458
    %s461 = sadd.s32 %s460, 1
    %p464 = scmp.eq.s32.totalorder %s27, 1
    %p465 = scmp.ne.s32.totalorder %s460, %s462
    %p466 = scmp.eq.s32.totalorder %s27, 0
    %p467 = por %p465, %p466
    %p468 = scmp.ne.s32.totalorder %s460, %s462
    %p469 = scmp.eq.s32.totalorder %s32, 1
    %p470 = por %p468, %p469
    %p471 = scmp.ne.s32.totalorder %s462, %s463
    %p472 = scmp.eq.s32.totalorder %s32, 0
    %p473 = por %p471, %p472
    %p474 = scmp.ne.s32.totalorder %s462, %s463
    %p475 = scmp.eq.s32.totalorder %s33, 1
    %p476 = por %p474, %p475
    %p478 = scmp.ne.s32.totalorder %s463, %s477
    %p479 = scmp.eq.s32.totalorder %s33, 0
    %p480 = por %p478, %p479
    %s481 = ssub.s32 %s27, %s34
    %p482 = scmp.eq.s32.totalorder %s481, 0
    %s484 = sadd.s32 %s483, 1
    %s485 = scalar_select %p482, %s483, %s484
    %p488 = pneg %p482
    %p489 = scmp.eq.s32.totalorder %s27, 1
    %p490 = por %p488, %p489
    %p491 = scmp.ne.s32.totalorder %s483, %s486
    %p492 = scmp.eq.s32.totalorder %s27, 0
    %p493 = por %p491, %p492
    %p494 = scmp.ne.s32.totalorder %s483, %s486
    %p495 = scmp.eq.s32.totalorder %s32, 1
    %p496 = por %p494, %p495
    %p497 = scmp.ne.s32.totalorder %s486, %s487
    %p498 = scmp.eq.s32.totalorder %s32, 0
    %p499 = por %p497, %p498
    %p500 = scmp.ne.s32.totalorder %s486, %s487
    %p501 = scmp.eq.s32.totalorder %s33, 1
    %p502 = por %p500, %p501
    %p504 = scmp.ne.s32.totalorder %s487, %s503
    %p505 = scmp.eq.s32.totalorder %s33, 0
    %p506 = por %p504, %p505
    %p507 = scmp.le.s32.totalorder 1, %s27
    %p508 = scmp.lt.s32.totalorder %s27, 3
    %p509 = pnand %p507, %p508
    %p510 = pneg %p509
    // Predicated region
    $region9: #{adapted_x_model_forward.1} parent=5 // pred_check
      _
    $region10: #{adapted_x_model_forward.1} parent=5 // pred_check_branch
      %512 = sbr.rel (%p509) target = $region12
    $region11: #{adapted_x_model_forward.1} parent=5 // pred_region
      %s513 = ssub.s32 %s27, 1
      // Predicated region
      $region13: #{adapted_x_model_forward.1} parent=11 // pred_check
        %p514 = pneg %p74
      $region14: #{adapted_x_model_forward.1} parent=11 // pred_check_branch
        %516 = sbr.rel (%p514) target = $region16
      $region15: #{adapted_x_model_forward.1} parent=11 // pred_region
        _
      $region16: #{adapted_x_model_forward.1} parent=11 // pred_fallthru
        _
      // Predicated region
      $region17: #{adapted_x_model_forward.1} parent=11 // pred_check
        %p517 = pneg %p95
      $region18: #{adapted_x_model_forward.1} parent=11 // pred_check_branch
        %519 = sbr.rel (%p517) target = $region20
      $region19: #{adapted_x_model_forward.1} parent=11 // pred_region
        _
      $region20: #{adapted_x_model_forward.1} parent=11 // pred_fallthru
        _
      // Predicated region
      $region21: #{adapted_x_model_forward.1} parent=11 // pred_check
        %p520 = pneg %p116
      $region22: #{adapted_x_model_forward.1} parent=11 // pred_check_branch
        %522 = sbr.rel (%p520) target = $region24
      $region23: #{adapted_x_model_forward.1} parent=11 // pred_region
        _
      $region24: #{adapted_x_model_forward.1} parent=11 // pred_fallthru
        _
      // Predicated region
      $region25: #{adapted_x_model_forward.1} parent=11 // pred_check
        %p523 = pneg %p137
      $region26: #{adapted_x_model_forward.1} parent=11 // pred_check_branch
        %525 = sbr.rel (%p523) target = $region28
      $region27: #{adapted_x_model_forward.1} parent=11 // pred_region
        _
      $region28: #{adapted_x_model_forward.1} parent=11 // pred_fallthru
        _
      // Predicated region
      $region29: #{adapted_x_model_forward.1} parent=11 // pred_check
        %p526 = pneg %p158
      $region30: #{adapted_x_model_forward.1} parent=11 // pred_check_branch
        %528 = sbr.rel (%p526) target = $region32
      $region31: #{adapted_x_model_forward.1} parent=11 // pred_region
        _
      $region32: #{adapted_x_model_forward.1} parent=11 // pred_fallthru
        _
      // Predicated region
      $region33: #{adapted_x_model_forward.1} parent=11 // pred_check
        %p529 = pneg %p179
      $region34: #{adapted_x_model_forward.1} parent=11 // pred_check_branch
        %531 = sbr.rel (%p529) target = $region36
      $region35: #{adapted_x_model_forward.1} parent=11 // pred_region
        _
      $region36: #{adapted_x_model_forward.1} parent=11 // pred_fallthru
        _
      // Predicated region
      $region37: #{adapted_x_model_forward.1} parent=11 // pred_check
        %p532 = pneg %p200
      $region38: #{adapted_x_model_forward.1} parent=11 // pred_check_branch
        %534 = sbr.rel (%p532) target = $region40
      $region39: #{adapted_x_model_forward.1} parent=11 // pred_region
        _
      $region40: #{adapted_x_model_forward.1} parent=11 // pred_fallthru
        _
      // Predicated region
      $region41: #{adapted_x_model_forward.1} parent=11 // pred_check
        %p535 = pneg %p221
      $region42: #{adapted_x_model_forward.1} parent=11 // pred_check_branch
        %537 = sbr.rel (%p535) target = $region44
      $region43: #{adapted_x_model_forward.1} parent=11 // pred_region
        _
      $region44: #{adapted_x_model_forward.1} parent=11 // pred_fallthru
        _
      // Predicated region
      $region45: #{adapted_x_model_forward.1} parent=11 // pred_check
        %p538 = pneg %p242
      $region46: #{adapted_x_model_forward.1} parent=11 // pred_check_branch
        %540 = sbr.rel (%p538) target = $region48
      $region47: #{adapted_x_model_forward.1} parent=11 // pred_region
        _
      $region48: #{adapted_x_model_forward.1} parent=11 // pred_fallthru
        _
      // Predicated region
      $region49: #{adapted_x_model_forward.1} parent=11 // pred_check
        %p541 = pneg %p263
      $region50: #{adapted_x_model_forward.1} parent=11 // pred_check_branch
        %543 = sbr.rel (%p541) target = $region52
      $region51: #{adapted_x_model_forward.1} parent=11 // pred_region
        _
      $region52: #{adapted_x_model_forward.1} parent=11 // pred_fallthru
        _
      // Predicated region
      $region53: #{adapted_x_model_forward.1} parent=11 // pred_check
        %p544 = pneg %p284
      $region54: #{adapted_x_model_forward.1} parent=11 // pred_check_branch
        %546 = sbr.rel (%p544) target = $region56
      $region55: #{adapted_x_model_forward.1} parent=11 // pred_region
        _
      $region56: #{adapted_x_model_forward.1} parent=11 // pred_fallthru
        _
      // Predicated region
      $region57: #{adapted_x_model_forward.1} parent=11 // pred_check
        %p547 = pneg %p305
      $region58: #{adapted_x_model_forward.1} parent=11 // pred_check_branch
        %549 = sbr.rel (%p547) target = $region60
      $region59: #{adapted_x_model_forward.1} parent=11 // pred_region
        _
      $region60: #{adapted_x_model_forward.1} parent=11 // pred_fallthru
        _
      // Predicated region
      $region61: #{adapted_x_model_forward.1} parent=11 // pred_check
        %p550 = pneg %p326
      $region62: #{adapted_x_model_forward.1} parent=11 // pred_check_branch
        %552 = sbr.rel (%p550) target = $region64
      $region63: #{adapted_x_model_forward.1} parent=11 // pred_region
        _
      $region64: #{adapted_x_model_forward.1} parent=11 // pred_fallthru
        _
      // Predicated region
      $region65: #{adapted_x_model_forward.1} parent=11 // pred_check
        %p553 = pneg %p347
      $region66: #{adapted_x_model_forward.1} parent=11 // pred_check_branch
        %555 = sbr.rel (%p553) target = $region68
      $region67: #{adapted_x_model_forward.1} parent=11 // pred_region
        _
      $region68: #{adapted_x_model_forward.1} parent=11 // pred_fallthru
        _
      // Predicated region
      $region69: #{adapted_x_model_forward.1} parent=11 // pred_check
        %p556 = pneg %p368
      $region70: #{adapted_x_model_forward.1} parent=11 // pred_check_branch
        %558 = sbr.rel (%p556) target = $region72
      $region71: #{adapted_x_model_forward.1} parent=11 // pred_region
        _
      $region72: #{adapted_x_model_forward.1} parent=11 // pred_fallthru
        _
      // Predicated region
      $region73: #{adapted_x_model_forward.1} parent=11 // pred_check
        %p559 = pneg %p389
      $region74: #{adapted_x_model_forward.1} parent=11 // pred_check_branch
        %561 = sbr.rel (%p559) target = $region76
      $region75: #{adapted_x_model_forward.1} parent=11 // pred_region
        _
      $region76: #{adapted_x_model_forward.1} parent=11 // pred_fallthru
        _
      // Predicated region
      $region77: #{adapted_x_model_forward.1} parent=11 // pred_check
        %p562 = pneg %p410
      $region78: #{adapted_x_model_forward.1} parent=11 // pred_check_branch
        %564 = sbr.rel (%p562) target = $region80
      $region79: #{adapted_x_model_forward.1} parent=11 // pred_region
        _
      $region80: #{adapted_x_model_forward.1} parent=11 // pred_fallthru
        _
      // Predicated region
      $region81: #{adapted_x_model_forward.1} parent=11 // pred_check
        %p565 = pneg %p431
      $region82: #{adapted_x_model_forward.1} parent=11 // pred_check_branch
        %567 = sbr.rel (%p565) target = $region84
      $region83: #{adapted_x_model_forward.1} parent=11 // pred_region
        _
      $region84: #{adapted_x_model_forward.1} parent=11 // pred_fallthru
        _
      // Predicated region
      $region85: #{adapted_x_model_forward.1} parent=11 // pred_check
        %p568 = pneg %p452
      $region86: #{adapted_x_model_forward.1} parent=11 // pred_check_branch
        %570 = sbr.rel (%p568) target = $region88
      $region87: #{adapted_x_model_forward.1} parent=11 // pred_region
        _
      $region88: #{adapted_x_model_forward.1} parent=11 // pred_fallthru
        _
      // Predicated region
      $region89: #{adapted_x_model_forward.1} parent=11 // pred_check
        %p571 = pneg %p473
      $region90: #{adapted_x_model_forward.1} parent=11 // pred_check_branch
        %573 = sbr.rel (%p571) target = $region92
      $region91: #{adapted_x_model_forward.1} parent=11 // pred_region
        _
      $region92: #{adapted_x_model_forward.1} parent=11 // pred_fallthru
        _
    $region12: #{adapted_x_model_forward.1} parent=5 // pred_fallthru
      _
    %p574 = scmp.lt.s32.totalorder %s27, 2
    // Predicated region
    $region93: #{adapted_x_model_forward.1} parent=5 // pred_check
      %p575 = pneg %p574
    $region94: #{adapted_x_model_forward.1} parent=5 // pred_check_branch
      %577 = sbr.rel (%p575) target = $region96
    $region95: #{adapted_x_model_forward.1} parent=5 // pred_region
      // Predicated region
      $region97: #{adapted_x_model_forward.1} parent=95 // pred_check
        %p578 = pneg %p47
      $region98: #{adapted_x_model_forward.1} parent=95 // pred_check_branch
        %580 = sbr.rel (%p578) target = $region100
      $region99: #{adapted_x_model_forward.1} parent=95 // pred_region
        %p581 = scmp.lt.s32.totalorder %s27, 1
        %s582 = scalar_select %p581, %s27, 1
        %s583 = smul.addr %s582, 8
        %s584 = scalar_lea.vmem %s0, %s583
      $region100: #{adapted_x_model_forward.1} parent=95 // pred_fallthru
        _
    $region96: #{adapted_x_model_forward.1} parent=5 // pred_fallthru
      _
    %p585 = scmp.le.s32.totalorder 1, %s27
    %p586 = scmp.lt.s32.totalorder %s27, 3
    %p587 = pnand %p585, %p586
    %p588 = pneg %p587
    // Predicated region
    $region101: #{adapted_x_model_forward.1} parent=5 // pred_check
      _
    $region102: #{adapted_x_model_forward.1} parent=5 // pred_check_branch
      %590 = sbr.rel (%p587) target = $region104
    $region103: #{adapted_x_model_forward.1} parent=5 // pred_region
      %s591 = ssub.s32 %s27, 1
      %p592 = scmp.lt.s32.totalorder %s32, 1
      %s593 = scalar_select %p592, %s32, 1
      %s594 = smul.addr %s593, 8
      %s595 = scalar_lea.vmem %s0, %s594
      %p596 = pneg %p53
      %p597 = pneg %p50
      %p598 = pneg %p74
      %p599 = pneg %p71
      %p600 = pneg %p95
      %p601 = pneg %p92
      %p602 = pneg %p116
      %p603 = pneg %p113
      %p604 = pneg %p137
      %p605 = pneg %p134
      %p606 = pneg %p158
      %p607 = pneg %p155
      %p608 = pneg %p179
      %p609 = pneg %p176
      %p610 = pneg %p200
      %p611 = pneg %p197
      %p612 = pneg %p221
      %p613 = pneg %p218
      %p614 = pneg %p242
      %p615 = pneg %p239
      %p616 = pneg %p263
      %p617 = pneg %p260
      %p618 = pneg %p284
      %p619 = pneg %p281
      %p620 = pneg %p305
      %p621 = pneg %p302
      %p622 = pneg %p326
      %p623 = pneg %p323
      %p624 = pneg %p347
      %p625 = pneg %p344
      %p626 = pneg %p368
      %p627 = pneg %p365
      %p628 = pneg %p389
      %p629 = pneg %p386
      %p630 = pneg %p410
      %p631 = pneg %p407
      %p632 = pneg %p431
      %p633 = pneg %p428
      %p634 = pneg %p452
      %p635 = pneg %p449
      %p636 = pneg %p473
      %p637 = pneg %p470
      %p638 = pneg %p499
      %p639 = pneg %p496
      %p640 = scmp.lt.s32.totalorder %s32, 1
      %s641 = scalar_select %p640, %s32, 1
      %s642 = smul.addr %s641, 8
      %s643 = scalar_lea.vmem %s21, %s642
      %p644 = scmp.lt.s32.totalorder %s32, 1
      %s645 = scalar_select %p644, %s32, 1
      %s646 = smul.addr %s645, 8
      %s647 = scalar_lea.vmem %s0, %s646
      %p648 = scmp.lt.s32.totalorder %s32, 1
      %s649 = scalar_select %p648, %s32, 1
      %s650 = smul.addr %s649, 8
      %s651 = scalar_lea.vmem %s21, %s650
      %v653 = vld [vmem:[%s647] sm:$0xff]
      %v654 = vld [vmem:[%s1] sm:$0x1]
      %656 = vset.pattern.permute.xlu0 16
      %657 = vperm.xlu0 %656, %v653
      %v658 = vpop.permute.xlu0 %657
      %v661 = vlaneseq
      %v662 = vshrl.u32 %v661, 7
      %v663 = vsub.s32 0, %v662
      %v664 = vrot.slane %v654, %v663
      %v666 = vmul.f32 %v658, %v664
      %v667 = vld [vmem:[%s2] sm:$0x1]
      %v669 = vlaneseq
      %v670 = vshrl.u32 %v669, 7
      %v671 = vsub.s32 0, %v670
      %v672 = vrot.slane %v667, %v671
      %v674 = vadd.f32 %v666, %v672
      %v675 = vpack.c.bf16 %v674, %v674
      %v676 = vld [vmem:[%s3] sm:$0xf]
      %v677 = vld [vmem:[%s3 + $0x4] sm:$0xf]
      %v678 = vld [vmem:[%s3 + $0x8] sm:$0xf]
      %v679 = vld [vmem:[%s3 + $0xc] sm:$0xf]
      %v680 = vld [vmem:[%s4] sm:$0x1]
      %v682 = vlaneseq
      %v683 = vshrl.u32 %v682, 7
      %v684 = vsub.s32 0, %v683
      %v685 = vrot.slane %v680, %v684
      %v691 = vunpack.c.l.b16 %v676
      %v692 = vunpack.c.l.b16 %v677
      %v693 = vunpack.c.l.b16 %v678
      %v694 = vunpack.c.l.b16 %v679
      %v695 = vpack.c.b16 %v692, %v691
      %v696 = vpack.c.b16 %v694, %v693
      %vm699 = vcmask 261120
      %v701 = vsel %vm699, %v675, 0
      %703 = vmatprep.subr.bf16.mxu0 0
      %704 = vmatpush1.bf16.msra.mxu0 %v695
      %705 = vmatprep.subr.bf16.mxu0 0
      %706 = vmatpush1.bf16.msra.mxu0 %v696
      %707 = vmatprep.subr.bf16.mxu0 0
      %708 = vmatpush1.bf16.msra.mxu0 0
      %709 = vmatprep.subr.bf16.mxu0 0
      %710 = vmatpush1.bf16.msra.mxu0 0
      %711 = vmatprep.subr.bf16.mxu0 0
      %712 = vmatpush1.bf16.msra.mxu0 0
      %713 = vmatprep.subr.bf16.mxu0 0
      %714 = vmatpush1.bf16.msra.mxu0 0
      %715 = vmatprep.subr.bf16.mxu0 0
      %716 = vmatpush1.bf16.msra.mxu0 0
      %717 = vmatprep.subr.bf16.mxu0 0
      %718 = vmatpush1.bf16.msra.mxu0 0
      %719 = vmatprep.subr.bf16.mxu0 0
      %720 = vmatpush1.bf16.msra.mxu0 0
      %721 = vmatprep.subr.bf16.mxu0 0
      %722 = vmatpush1.bf16.msra.mxu0 0
      %723 = vmatprep.subr.bf16.mxu0 0
      %724 = vmatpush1.bf16.msra.mxu0 0
      %725 = vmatprep.subr.bf16.mxu0 0
      %726 = vmatpush1.bf16.msra.mxu0 0
      %727 = vmatprep.subr.bf16.mxu0 0
      %728 = vmatpush1.bf16.msra.mxu0 0
      %729 = vmatprep.subr.bf16.mxu0 0
      %730 = vmatpush1.bf16.msra.mxu0 0
      %731 = vmatprep.subr.bf16.mxu0 0
      %732 = vmatpush1.bf16.msra.mxu0 0
      %733 = vmatprep.subr.bf16.mxu0 0
      %734 = vmatpush1.bf16.msra.mxu0 0
      %735 = vmatprep.mubr.bf16.mxu0 0
      %736 = vmatmul.mubr.bf16.gmra.mrb[0].mxu0 %v701
      %v737 = vpop.f32.mrb[0].mxu0
      %v738 = vadd.f32 %v685, %v737
      %v739 = vpop.f32.mrb[0].mxu0
      %v740 = vpop.f32.mrb[0].mxu0
      %v741 = vpop.f32.mrb[0].mxu0
      %742 = vdwg.mxu0
      %v743 = vmax.f32 %v738, 0.0
      %v744 = vpack.c.bf16 %v653, %v653
      %v745 = vld [vmem:[%s5] sm:$0xf]
      %v746 = vld [vmem:[%s6] sm:$0x1]
      %v748 = vlaneseq
      %v749 = vshrl.u32 %v748, 7
      %v750 = vsub.s32 0, %v749
      %v751 = vrot.slane %v746, %v750
      %vm753 = vcmask 64512
      %v755 = vsel %vm753, %v744, 0
      %vm757 = vcmask 1043456
      %v759 = vsel %vm757, %v745, 0
      %761 = vmatprep.subr.bf16.mxu0 0
      %762 = vmatpush1.bf16.msra.mxu0 %v759
      %763 = vmatprep.subr.bf16.mxu0 0
      %764 = vmatpush1.bf16.msra.mxu0 0
      %765 = vmatprep.subr.bf16.mxu0 0
      %766 = vmatpush1.bf16.msra.mxu0 0
      %767 = vmatprep.subr.bf16.mxu0 0
      %768 = vmatpush1.bf16.msra.mxu0 0
      %769 = vmatprep.subr.bf16.mxu0 0
      %770 = vmatpush1.bf16.msra.mxu0 0
      %771 = vmatprep.subr.bf16.mxu0 0
      %772 = vmatpush1.bf16.msra.mxu0 0
      %773 = vmatprep.subr.bf16.mxu0 0
      %774 = vmatpush1.bf16.msra.mxu0 0
      %775 = vmatprep.subr.bf16.mxu0 0
      %776 = vmatpush1.bf16.msra.mxu0 0
      %777 = vmatprep.subr.bf16.mxu0 0
      %778 = vmatpush1.bf16.msra.mxu0 0
      %779 = vmatprep.subr.bf16.mxu0 0
      %780 = vmatpush1.bf16.msra.mxu0 0
      %781 = vmatprep.subr.bf16.mxu0 0
      %782 = vmatpush1.bf16.msra.mxu0 0
      %783 = vmatprep.subr.bf16.mxu0 0
      %784 = vmatpush1.bf16.msra.mxu0 0
      %785 = vmatprep.subr.bf16.mxu0 0
      %786 = vmatpush1.bf16.msra.mxu0 0
      %787 = vmatprep.subr.bf16.mxu0 0
      %788 = vmatpush1.bf16.msra.mxu0 0
      %789 = vmatprep.subr.bf16.mxu0 0
      %790 = vmatpush1.bf16.msra.mxu0 0
      %791 = vmatprep.subr.bf16.mxu0 0
      %792 = vmatpush1.bf16.msra.mxu0 0
      %793 = vmatprep.mubr.bf16.mxu0 0
      %794 = vmatmul.mubr.bf16.gmra.mrb[0].mxu0 %v755
      %v795 = vpop.f32.mrb[0].mxu0
      %v796 = vadd.f32 %v751, %v795
      %v797 = vpop.f32.mrb[0].mxu0
      %v798 = vpop.f32.mrb[0].mxu0
      %v799 = vpop.f32.mrb[0].mxu0
      %800 = vdwg.mxu0
      %v801 = vmax.f32 %v796, 0.0
      %803 = vrot.lane.b32.xlu0 %v801, 32
      %v804 = vpop.permute.xlu0 %803
      %v806 = vsel %vm699, %v743, %v804
      %v807 = vpack.c.bf16 %v806, %v806
      %v808 = vld [vmem:[%s7] sm:$0xf]
      %v809 = vld [vmem:[%s7 + $0x4] sm:$0xf]
      %v810 = vld [vmem:[%s7 + $0x8] sm:$0xf]
      %v811 = vld [vmem:[%s7 + $0xc] sm:$0xf]
      %v812 = vld [vmem:[%s7 + $0x10] sm:$0xf]
      %v813 = vld [vmem:[%s7 + $0x14] sm:$0xf]
      %v814 = vld [vmem:[%s7 + $0x18] sm:$0xf]
      %v815 = vld [vmem:[%s7 + $0x1c] sm:$0xf]
      %v816 = vld [vmem:[%s8] sm:$0x1]
      %v818 = vlaneseq
      %v819 = vshrl.u32 %v818, 7
      %v820 = vsub.s32 0, %v819
      %v821 = vrot.slane %v816, %v820
      %v831 = vunpack.c.l.b16 %v808
      %v832 = vunpack.c.l.b16 %v809
      %v833 = vunpack.c.l.b16 %v810
      %v834 = vunpack.c.l.b16 %v811
      %v835 = vunpack.c.l.b16 %v812
      %v836 = vunpack.c.l.b16 %v813
      %v837 = vunpack.c.l.b16 %v814
      %v838 = vunpack.c.l.b16 %v815
      %v839 = vpack.c.b16 %v832, %v831
      %v840 = vpack.c.b16 %v834, %v833
      %v841 = vpack.c.b16 %v836, %v835
      %v842 = vpack.c.b16 %v838, %v837
      %vm847 = vcmask 523264
      %v849 = vsel %vm847, %v807, 0
      %851 = vmatprep.subr.bf16.mxu0 0
      %852 = vmatpush1.bf16.msra.mxu0 %v839
      %853 = vmatprep.subr.bf16.mxu0 0
      %854 = vmatpush1.bf16.msra.mxu0 %v840
      %855 = vmatprep.subr.bf16.mxu0 0
      %856 = vmatpush1.bf16.msra.mxu0 %v841
      %857 = vmatprep.subr.bf16.mxu0 0
      %858 = vmatpush1.bf16.msra.mxu0 %v842
      %859 = vmatprep.subr.bf16.mxu0 0
      %860 = vmatpush1.bf16.msra.mxu0 0
      %861 = vmatprep.subr.bf16.mxu0 0
      %862 = vmatpush1.bf16.msra.mxu0 0
      %863 = vmatprep.subr.bf16.mxu0 0
      %864 = vmatpush1.bf16.msra.mxu0 0
      %865 = vmatprep.subr.bf16.mxu0 0
      %866 = vmatpush1.bf16.msra.mxu0 0
      %867 = vmatprep.subr.bf16.mxu0 0
      %868 = vmatpush1.bf16.msra.mxu0 0
      %869 = vmatprep.subr.bf16.mxu0 0
      %870 = vmatpush1.bf16.msra.mxu0 0
      %871 = vmatprep.subr.bf16.mxu0 0
      %872 = vmatpush1.bf16.msra.mxu0 0
      %873 = vmatprep.subr.bf16.mxu0 0
      %874 = vmatpush1.bf16.msra.mxu0 0
      %875 = vmatprep.subr.bf16.mxu0 0
      %876 = vmatpush1.bf16.msra.mxu0 0
      %877 = vmatprep.subr.bf16.mxu0 0
      %878 = vmatpush1.bf16.msra.mxu0 0
      %879 = vmatprep.subr.bf16.mxu0 0
      %880 = vmatpush1.bf16.msra.mxu0 0
      %881 = vmatprep.subr.bf16.mxu0 0
      %882 = vmatpush1.bf16.msra.mxu0 0
      %883 = vmatprep.mubr.bf16.mxu0 0
      %884 = vmatmul.mubr.bf16.gmra.mrb[0].mxu0 %v849
      %v885 = vpop.f32.mrb[0].mxu0
      %v886 = vadd.f32 %v821, %v885
      %v887 = vpop.f32.mrb[0].mxu0
      %v888 = vpop.f32.mrb[0].mxu0
      %v889 = vpop.f32.mrb[0].mxu0
      %890 = vdwg.mxu0
      %v891 = vmax.f32 %v886, 0.0
      %v892 = vpack.c.bf16 %v891, %v891
      %v893 = vld [vmem:[%s9] sm:$0xf]
      %v894 = vld [vmem:[%s9 + $0x4] sm:$0xf]
      %v895 = vld [vmem:[%s9 + $0x8] sm:$0xf]
      %v896 = vld [vmem:[%s9 + $0xc] sm:$0xf]
      %v901 = vunpack.c.l.b16 %v893
      %v902 = vunpack.c.l.b16 %v894
      %v903 = vunpack.c.l.b16 %v895
      %v904 = vunpack.c.l.b16 %v896
      %v905 = vpack.c.b16 %v902, %v901
      %v906 = vpack.c.b16 %v904, %v903
      %v910 = vsel %vm699, %v892, 0
      %912 = vmatprep.subr.bf16.mxu0 0
      %913 = vmatpush1.bf16.msra.mxu0 %v905
      %914 = vmatprep.subr.bf16.mxu0 0
      %915 = vmatpush1.bf16.msra.mxu0 %v906
      %916 = vmatprep.subr.bf16.mxu0 0
      %917 = vmatpush1.bf16.msra.mxu0 0
      %918 = vmatprep.subr.bf16.mxu0 0
      %919 = vmatpush1.bf16.msra.mxu0 0
      %920 = vmatprep.subr.bf16.mxu0 0
      %921 = vmatpush1.bf16.msra.mxu0 0
      %922 = vmatprep.subr.bf16.mxu0 0
      %923 = vmatpush1.bf16.msra.mxu0 0
      %924 = vmatprep.subr.bf16.mxu0 0
      %925 = vmatpush1.bf16.msra.mxu0 0
      %926 = vmatprep.subr.bf16.mxu0 0
      %927 = vmatpush1.bf16.msra.mxu0 0
      %928 = vmatprep.subr.bf16.mxu0 0
      %929 = vmatpush1.bf16.msra.mxu0 0
      %930 = vmatprep.subr.bf16.mxu0 0
      %931 = vmatpush1.bf16.msra.mxu0 0
      %932 = vmatprep.subr.bf16.mxu0 0
      %933 = vmatpush1.bf16.msra.mxu0 0
      %934 = vmatprep.subr.bf16.mxu0 0
      %935 = vmatpush1.bf16.msra.mxu0 0
      %936 = vmatprep.subr.bf16.mxu0 0
      %937 = vmatpush1.bf16.msra.mxu0 0
      %938 = vmatprep.subr.bf16.mxu0 0
      %939 = vmatpush1.bf16.msra.mxu0 0
      %940 = vmatprep.subr.bf16.mxu0 0
      %941 = vmatpush1.bf16.msra.mxu0 0
      %942 = vmatprep.subr.bf16.mxu0 0
      %943 = vmatpush1.bf16.msra.mxu0 0
      %944 = vmatprep.mubr.bf16.mxu0 0
      %945 = vmatmul.mubr.bf16.gmra.mrb[0].mxu0 %v910
      %v946 = vpop.f32.mrb[0].mxu0
      %v947 = vadd.f32 0.0, %v946
      %v948 = vpop.f32.mrb[0].mxu0
      %v949 = vpop.f32.mrb[0].mxu0
      %v950 = vpop.f32.mrb[0].mxu0
      %951 = vdwg.mxu0
      %v952 = vadd.f32 %v674, %v947
      %v953 = vld [vmem:[%s10] sm:$0x1]
      %v955 = vlaneseq
      %v956 = vshrl.u32 %v955, 7
      %v957 = vsub.s32 0, %v956
      %v958 = vrot.slane %v953, %v957
      %v960 = vadd.f32 %v952, %v958
      %v961 = vpack.c.bf16 %v960, %v960
      %v962 = vld [vmem:[%s11] sm:$0xf]
      %v963 = vld [vmem:[%s11 + $0x4] sm:$0xf]
      %v964 = vld [vmem:[%s11 + $0x8] sm:$0xf]
      %v965 = vld [vmem:[%s11 + $0xc] sm:$0xf]
      %v966 = vld [vmem:[%s12] sm:$0x1]
      %v968 = vlaneseq
      %v969 = vshrl.u32 %v968, 7
      %v970 = vsub.s32 0, %v969
      %v971 = vrot.slane %v966, %v970
      %v977 = vunpack.c.l.b16 %v962
      %v978 = vunpack.c.l.b16 %v963
      %v979 = vunpack.c.l.b16 %v964
      %v980 = vunpack.c.l.b16 %v965
      %v981 = vpack.c.b16 %v978, %v977
      %v982 = vpack.c.b16 %v980, %v979
      %v986 = vsel %vm699, %v961, 0
      %988 = vmatprep.subr.bf16.mxu0 0
      %989 = vmatpush1.bf16.msra.mxu0 %v981
      %990 = vmatprep.subr.bf16.mxu0 0
      %991 = vmatpush1.bf16.msra.mxu0 %v982
      %992 = vmatprep.subr.bf16.mxu0 0
      %993 = vmatpush1.bf16.msra.mxu0 0
      %994 = vmatprep.subr.bf16.mxu0 0
      %995 = vmatpush1.bf16.msra.mxu0 0
      %996 = vmatprep.subr.bf16.mxu0 0
      %997 = vmatpush1.bf16.msra.mxu0 0
      %998 = vmatprep.subr.bf16.mxu0 0
      %999 = vmatpush1.bf16.msra.mxu0 0
      %1000 = vmatprep.subr.bf16.mxu0 0
      %1001 = vmatpush1.bf16.msra.mxu0 0
      %1002 = vmatprep.subr.bf16.mxu0 0
      %1003 = vmatpush1.bf16.msra.mxu0 0
      %1004 = vmatprep.subr.bf16.mxu0 0
      %1005 = vmatpush1.bf16.msra.mxu0 0
      %1006 = vmatprep.subr.bf16.mxu0 0
      %1007 = vmatpush1.bf16.msra.mxu0 0
      %1008 = vmatprep.subr.bf16.mxu0 0
      %1009 = vmatpush1.bf16.msra.mxu0 0
      %1010 = vmatprep.subr.bf16.mxu0 0
      %1011 = vmatpush1.bf16.msra.mxu0 0
      %1012 = vmatprep.subr.bf16.mxu0 0
      %1013 = vmatpush1.bf16.msra.mxu0 0
      %1014 = vmatprep.subr.bf16.mxu0 0
      %1015 = vmatpush1.bf16.msra.mxu0 0
      %1016 = vmatprep.subr.bf16.mxu0 0
      %1017 = vmatpush1.bf16.msra.mxu0 0
      %1018 = vmatprep.subr.bf16.mxu0 0
      %1019 = vmatpush1.bf16.msra.mxu0 0
      %1020 = vmatprep.mubr.bf16.mxu0 0
      %1021 = vmatmul.mubr.bf16.gmra.mrb[0].mxu0 %v986
      %v1022 = vpop.f32.mrb[0].mxu0
      %v1023 = vadd.f32 %v971, %v1022
      %v1024 = vpop.f32.mrb[0].mxu0
      %v1025 = vpop.f32.mrb[0].mxu0
      %v1026 = vpop.f32.mrb[0].mxu0
      %1027 = vdwg.mxu0
      %v1028 = vld [vmem:[%s13] sm:$0xf]
      %v1029 = vld [vmem:[%s13 + $0x4] sm:$0xf]
      %v1030 = vld [vmem:[%s13 + $0x8] sm:$0xf]
      %v1031 = vld [vmem:[%s13 + $0xc] sm:$0xf]
      %v1032 = vld [vmem:[%s14] sm:$0x1]
      %v1034 = vlaneseq
      %v1035 = vshrl.u32 %v1034, 7
      %v1036 = vsub.s32 0, %v1035
      %v1037 = vrot.slane %v1032, %v1036
      %v1043 = vunpack.c.l.b16 %v1028
      %v1044 = vunpack.c.l.b16 %v1029
      %v1045 = vunpack.c.l.b16 %v1030
      %v1046 = vunpack.c.l.b16 %v1031
      %v1047 = vpack.c.b16 %v1044, %v1043
      %v1048 = vpack.c.b16 %v1046, %v1045
      %1051 = vmatprep.subr.bf16.mxu0 0
      %1052 = vmatpush1.bf16.msra.mxu0 %v1047
      %1053 = vmatprep.subr.bf16.mxu0 0
      %1054 = vmatpush1.bf16.msra.mxu0 %v1048
      %1055 = vmatprep.subr.bf16.mxu0 0
      %1056 = vmatpush1.bf16.msra.mxu0 0
      %1057 = vmatprep.subr.bf16.mxu0 0
      %1058 = vmatpush1.bf16.msra.mxu0 0
      %1059 = vmatprep.subr.bf16.mxu0 0
      %1060 = vmatpush1.bf16.msra.mxu0 0
      %1061 = vmatprep.subr.bf16.mxu0 0
      %1062 = vmatpush1.bf16.msra.mxu0 0
      %1063 = vmatprep.subr.bf16.mxu0 0
      %1064 = vmatpush1.bf16.msra.mxu0 0
      %1065 = vmatprep.subr.bf16.mxu0 0
      %1066 = vmatpush1.bf16.msra.mxu0 0
      %1067 = vmatprep.subr.bf16.mxu0 0
      %1068 = vmatpush1.bf16.msra.mxu0 0
      %1069 = vmatprep.subr.bf16.mxu0 0
      %1070 = vmatpush1.bf16.msra.mxu0 0
      %1071 = vmatprep.subr.bf16.mxu0 0
      %1072 = vmatpush1.bf16.msra.mxu0 0
      %1073 = vmatprep.subr.bf16.mxu0 0
      %1074 = vmatpush1.bf16.msra.mxu0 0
      %1075 = vmatprep.subr.bf16.mxu0 0
      %1076 = vmatpush1.bf16.msra.mxu0 0
      %1077 = vmatprep.subr.bf16.mxu0 0
      %1078 = vmatpush1.bf16.msra.mxu0 0
      %1079 = vmatprep.subr.bf16.mxu0 0
      %1080 = vmatpush1.bf16.msra.mxu0 0
      %1081 = vmatprep.subr.bf16.mxu0 0
      %1082 = vmatpush1.bf16.msra.mxu0 0
      %1083 = vmatprep.mubr.bf16.mxu0 0
      %1084 = vmatmul.mubr.bf16.gmra.mrb[0].mxu0 %v986
      %v1085 = vpop.f32.mrb[0].mxu0
      %v1086 = vadd.f32 %v1037, %v1085
      %v1087 = vpop.f32.mrb[0].mxu0
      %v1088 = vpop.f32.mrb[0].mxu0
      %v1089 = vpop.f32.mrb[0].mxu0
      %1090 = vdwg.mxu0
      %v1091 = vmax.f32 %v1086, 0.0
      %v1092 = vld [vmem:[%s15] sm:$0xf]
      %v1093 = vld [vmem:[%s16] sm:$0x1]
      %v1095 = vlaneseq
      %v1096 = vshrl.u32 %v1095, 7
      %v1097 = vsub.s32 0, %v1096
      %v1098 = vrot.slane %v1093, %v1097
      %1101 = vrot.lane.b32.xlu0 %v744, 120
      %v1102 = vpop.permute.xlu0 %1101
      %v1104 = vsel %vm753, %v1102, 0
      %v1107 = vsel %vm757, %v1092, 0
      %1109 = vmatprep.subr.bf16.mxu0 0
      %1110 = vmatpush1.bf16.msra.mxu0 %v1107
      %1111 = vmatprep.subr.bf16.mxu0 0
      %1112 = vmatpush1.bf16.msra.mxu0 0
      %1113 = vmatprep.subr.bf16.mxu0 0
      %1114 = vmatpush1.bf16.msra.mxu0 0
      %1115 = vmatprep.subr.bf16.mxu0 0
      %1116 = vmatpush1.bf16.msra.mxu0 0
      %1117 = vmatprep.subr.bf16.mxu0 0
      %1118 = vmatpush1.bf16.msra.mxu0 0
      %1119 = vmatprep.subr.bf16.mxu0 0
      %1120 = vmatpush1.bf16.msra.mxu0 0
      %1121 = vmatprep.subr.bf16.mxu0 0
      %1122 = vmatpush1.bf16.msra.mxu0 0
      %1123 = vmatprep.subr.bf16.mxu0 0
      %1124 = vmatpush1.bf16.msra.mxu0 0
      %1125 = vmatprep.subr.bf16.mxu0 0
      %1126 = vmatpush1.bf16.msra.mxu0 0
      %1127 = vmatprep.subr.bf16.mxu0 0
      %1128 = vmatpush1.bf16.msra.mxu0 0
      %1129 = vmatprep.subr.bf16.mxu0 0
      %1130 = vmatpush1.bf16.msra.mxu0 0
      %1131 = vmatprep.subr.bf16.mxu0 0
      %1132 = vmatpush1.bf16.msra.mxu0 0
      %1133 = vmatprep.subr.bf16.mxu0 0
      %1134 = vmatpush1.bf16.msra.mxu0 0
      %1135 = vmatprep.subr.bf16.mxu0 0
      %1136 = vmatpush1.bf16.msra.mxu0 0
      %1137 = vmatprep.subr.bf16.mxu0 0
      %1138 = vmatpush1.bf16.msra.mxu0 0
      %1139 = vmatprep.subr.bf16.mxu0 0
      %1140 = vmatpush1.bf16.msra.mxu0 0
      %1141 = vmatprep.mubr.bf16.mxu0 0
      %1142 = vmatmul.mubr.bf16.gmra.mrb[0].mxu0 %v1104
      %v1143 = vpop.f32.mrb[0].mxu0
      %v1144 = vadd.f32 %v1098, %v1143
      %v1145 = vpop.f32.mrb[0].mxu0
      %v1146 = vpop.f32.mrb[0].mxu0
      %v1147 = vpop.f32.mrb[0].mxu0
      %1148 = vdwg.mxu0
      %v1149 = vmax.f32 %v1144, 0.0
      %1151 = vrot.lane.b32.xlu0 %v1149, 32
      %v1152 = vpop.permute.xlu0 %1151
      %v1154 = vsel %vm699, %v1091, %v1152
      %v1155 = vpack.c.bf16 %v1154, %v1154
      %v1156 = vld [vmem:[%s17] sm:$0xf]
      %v1157 = vld [vmem:[%s17 + $0x4] sm:$0xf]
      %v1158 = vld [vmem:[%s17 + $0x8] sm:$0xf]
      %v1159 = vld [vmem:[%s17 + $0xc] sm:$0xf]
      %v1160 = vld [vmem:[%s17 + $0x10] sm:$0xf]
      %v1161 = vld [vmem:[%s17 + $0x14] sm:$0xf]
      %v1162 = vld [vmem:[%s17 + $0x18] sm:$0xf]
      %v1163 = vld [vmem:[%s17 + $0x1c] sm:$0xf]
      %v1164 = vld [vmem:[%s18] sm:$0x1]
      %v1166 = vlaneseq
      %v1167 = vshrl.u32 %v1166, 7
      %v1168 = vsub.s32 0, %v1167
      %v1169 = vrot.slane %v1164, %v1168
      %v1179 = vunpack.c.l.b16 %v1156
      %v1180 = vunpack.c.l.b16 %v1157
      %v1181 = vunpack.c.l.b16 %v1158
      %v1182 = vunpack.c.l.b16 %v1159
      %v1183 = vunpack.c.l.b16 %v1160
      %v1184 = vunpack.c.l.b16 %v1161
      %v1185 = vunpack.c.l.b16 %v1162
      %v1186 = vunpack.c.l.b16 %v1163
      %v1187 = vpack.c.b16 %v1180, %v1179
      %v1188 = vpack.c.b16 %v1182, %v1181
      %v1189 = vpack.c.b16 %v1184, %v1183
      %v1190 = vpack.c.b16 %v1186, %v1185
      %v1196 = vsel %vm847, %v1155, 0
      %1198 = vmatprep.subr.bf16.mxu0 0
      %1199 = vmatpush1.bf16.msra.mxu0 %v1187
      %1200 = vmatprep.subr.bf16.mxu0 0
      %1201 = vmatpush1.bf16.msra.mxu0 %v1188
      %1202 = vmatprep.subr.bf16.mxu0 0
      %1203 = vmatpush1.bf16.msra.mxu0 %v1189
      %1204 = vmatprep.subr.bf16.mxu0 0
      %1205 = vmatpush1.bf16.msra.mxu0 %v1190
      %1206 = vmatprep.subr.bf16.mxu0 0
      %1207 = vmatpush1.bf16.msra.mxu0 0
      %1208 = vmatprep.subr.bf16.mxu0 0
      %1209 = vmatpush1.bf16.msra.mxu0 0
      %1210 = vmatprep.subr.bf16.mxu0 0
      %1211 = vmatpush1.bf16.msra.mxu0 0
      %1212 = vmatprep.subr.bf16.mxu0 0
      %1213 = vmatpush1.bf16.msra.mxu0 0
      %1214 = vmatprep.subr.bf16.mxu0 0
      %1215 = vmatpush1.bf16.msra.mxu0 0
      %1216 = vmatprep.subr.bf16.mxu0 0
      %1217 = vmatpush1.bf16.msra.mxu0 0
      %1218 = vmatprep.subr.bf16.mxu0 0
      %1219 = vmatpush1.bf16.msra.mxu0 0
      %1220 = vmatprep.subr.bf16.mxu0 0
      %1221 = vmatpush1.bf16.msra.mxu0 0
      %1222 = vmatprep.subr.bf16.mxu0 0
      %1223 = vmatpush1.bf16.msra.mxu0 0
      %1224 = vmatprep.subr.bf16.mxu0 0
      %1225 = vmatpush1.bf16.msra.mxu0 0
      %1226 = vmatprep.subr.bf16.mxu0 0
      %1227 = vmatpush1.bf16.msra.mxu0 0
      %1228 = vmatprep.subr.bf16.mxu0 0
      %1229 = vmatpush1.bf16.msra.mxu0 0
      %1230 = vmatprep.mubr.bf16.mxu0 0
      %1231 = vmatmul.mubr.bf16.gmra.mrb[0].mxu0 %v1196
      %v1232 = vpop.f32.mrb[0].mxu0
      %v1233 = vadd.f32 %v1169, %v1232
      %v1234 = vpop.f32.mrb[0].mxu0
      %v1235 = vpop.f32.mrb[0].mxu0
      %v1236 = vpop.f32.mrb[0].mxu0
      %1237 = vdwg.mxu0
      %v1238 = vmax.f32 %v1233, 0.0
      %v1239 = vpack.c.bf16 %v1238, %v1238
      %v1240 = vld [vmem:[%s19] sm:$0xf]
      %v1241 = vld [vmem:[%s19 + $0x4] sm:$0xf]
      %v1242 = vld [vmem:[%s19 + $0x8] sm:$0xf]
      %v1243 = vld [vmem:[%s19 + $0xc] sm:$0xf]
      %v1248 = vunpack.c.l.b16 %v1240
      %v1249 = vunpack.c.l.b16 %v1241
      %v1250 = vunpack.c.l.b16 %v1242
      %v1251 = vunpack.c.l.b16 %v1243
      %v1252 = vpack.c.b16 %v1249, %v1248
      %v1253 = vpack.c.b16 %v1251, %v1250
      %v1257 = vsel %vm699, %v1239, 0
      %1259 = vmatprep.subr.bf16.mxu0 0
      %1260 = vmatpush1.bf16.msra.mxu0 %v1252
      %1261 = vmatprep.subr.bf16.mxu0 0
      %1262 = vmatpush1.bf16.msra.mxu0 %v1253
      %1263 = vmatprep.subr.bf16.mxu0 0
      %1264 = vmatpush1.bf16.msra.mxu0 0
      %1265 = vmatprep.subr.bf16.mxu0 0
      %1266 = vmatpush1.bf16.msra.mxu0 0
      %1267 = vmatprep.subr.bf16.mxu0 0
      %1268 = vmatpush1.bf16.msra.mxu0 0
      %1269 = vmatprep.subr.bf16.mxu0 0
      %1270 = vmatpush1.bf16.msra.mxu0 0
      %1271 = vmatprep.subr.bf16.mxu0 0
      %1272 = vmatpush1.bf16.msra.mxu0 0
      %1273 = vmatprep.subr.bf16.mxu0 0
      %1274 = vmatpush1.bf16.msra.mxu0 0
      %1275 = vmatprep.subr.bf16.mxu0 0
      %1276 = vmatpush1.bf16.msra.mxu0 0
      %1277 = vmatprep.subr.bf16.mxu0 0
      %1278 = vmatpush1.bf16.msra.mxu0 0
      %1279 = vmatprep.subr.bf16.mxu0 0
      %1280 = vmatpush1.bf16.msra.mxu0 0
      %1281 = vmatprep.subr.bf16.mxu0 0
      %1282 = vmatpush1.bf16.msra.mxu0 0
      %1283 = vmatprep.subr.bf16.mxu0 0
      %1284 = vmatpush1.bf16.msra.mxu0 0
      %1285 = vmatprep.subr.bf16.mxu0 0
      %1286 = vmatpush1.bf16.msra.mxu0 0
      %1287 = vmatprep.subr.bf16.mxu0 0
      %1288 = vmatpush1.bf16.msra.mxu0 0
      %1289 = vmatprep.subr.bf16.mxu0 0
      %1290 = vmatpush1.bf16.msra.mxu0 0
      %1291 = vmatprep.mubr.bf16.mxu0 0
      %1292 = vmatmul.mubr.bf16.gmra.mrb[0].mxu0 %v1257
      %v1293 = vpop.f32.mrb[0].mxu0
      %v1294 = vadd.f32 0.0, %v1293
      %v1295 = vpop.f32.mrb[0].mxu0
      %v1296 = vpop.f32.mrb[0].mxu0
      %v1297 = vpop.f32.mrb[0].mxu0
      %1298 = vdwg.mxu0
      %v1299 = vadd.f32 %v1023, %v1294
      %v1300 = vld [vmem:[%s20] sm:$0x1]
      %v1302 = vlaneseq
      %v1303 = vshrl.u32 %v1302, 7
      %v1304 = vsub.s32 0, %v1303
      %v1305 = vrot.slane %v1300, %v1304
      %v1307 = vadd.f32 %v1299, %v1305
      %1308 = vst [vmem:[%s651] sm:$0xff] %v1307
      %p1309 = scmp.lt.s32.totalorder %s32, 1
      %s1310 = scalar_select %p1309, %s32, 1
      %s1311 = smul.addr %s1310, 8
      %s1312 = scalar_lea.vmem %s21, %s1311
      // Predicated region
      $region105: #{adapted_x_model_forward.1} parent=103 // pred_check
        %p1313 = pneg %p496
      $region106: #{adapted_x_model_forward.1} parent=103 // pred_check_branch
        %1315 = sbr.rel (%p1313) target = $region108
      $region107: #{adapted_x_model_forward.1} parent=103 // pred_region
        _
      $region108: #{adapted_x_model_forward.1} parent=103 // pred_fallthru
        _
    $region104: #{adapted_x_model_forward.1} parent=5 // pred_fallthru
      _
    %p1316 = scmp.le.s32.totalorder 2, %s27
    // Predicated region
    $region109: #{adapted_x_model_forward.1} parent=5 // pred_check
      %p1317 = pneg %p1316
    $region110: #{adapted_x_model_forward.1} parent=5 // pred_check_branch
      %1319 = sbr.rel (%p1317) target = $region112
    $region111: #{adapted_x_model_forward.1} parent=5 // pred_region
      %s1320 = ssub.s32 %s27, 2
      // Predicated region
      $region113: #{adapted_x_model_forward.1} parent=111 // pred_check
        %p1321 = pneg %p502
      $region114: #{adapted_x_model_forward.1} parent=111 // pred_check_branch
        %1323 = sbr.rel (%p1321) target = $region116
      $region115: #{adapted_x_model_forward.1} parent=111 // pred_region
        %p1324 = scmp.lt.s32.totalorder %s33, 1
        %s1325 = scalar_select %p1324, %s33, 1
        %s1326 = smul.addr %s1325, 8
        %s1327 = scalar_lea.vmem %s21, %s1326
      $region116: #{adapted_x_model_forward.1} parent=111 // pred_fallthru
        _
    $region112: #{adapted_x_model_forward.1} parent=5 // pred_fallthru
      _
  $region6: #{adapted_x_model_forward.1} parent=0 // loop_footer
    %s31 = sadd.s32 1, %s27
  $region7: #{adapted_x_model_forward.1} parent=0 // loop_footer_branch
    %26 = sbr.rel target = $region3
  $region8: #{adapted_x_model_forward.1} parent=0 // loop_exit
    _

</llo_original>
